<compile_context>
chip_gen: v7x
topology: tpu7x:2x2x1
jax: 0.10.0
libtpu: 0.0.40
codegen_flags: <defaults>
</compile_context>

<pallas_src>
import numpy as np
import jax
import jax.numpy as jnp
from jax.experimental import pallas as pl
from jax.experimental.pallas import tpu as pltpu

# ------------------------- model hyperparameters -------------------------
DIM_IN = 3
DIM_COND = 8
DIM_OUT = 4
N_NEURONS = 64
MULTIRES = 2                             # freq bands: 2**linspace(0,1,2) = [1., 2.]
EMB_DIM = DIM_IN * (1 + 2 * MULTIRES)    # 15
SKIP_OUT = N_NEURONS - EMB_DIM           # 49
LEAKY_SLOPE = 0.01
INV_SQRT2 = 1.0 / np.sqrt(2.0)


def _leaky_relu(x):
    return jnp.where(x > 0, x, LEAKY_SLOPE * x)


# ------------------------------ Pallas kernel -----------------------------
# Inputs (per grid step i):
#   x_ref   : (3, TM)    coords tile, points on the lane axis
#   w64_ref : (132, 64)  [W1_pad.T ; (W2[:49]/sqrt2).T padded ; W3.T]
#   w15_ref : (128, 15)  [W0[:15].T ; (W2[49:]/sqrt2).T]   (one merged K=15 dot)
#   b_ref   : (64, 4)    columns = [b0 + cond@W0[15:23], b1_pad, b2, b3_pad]
#   out_ref : (4, TM)
def mlp_kernel(x_ref, w64_ref, w15_ref, b_ref, out_ref):
    x = x_ref[...]                                             # (3, TM)
    # Positional embedding, built once; freqs = [1, 2].  Sublane concat is
    # cheap and lets the emb-dependent weights use a single fused matmul.
    emb = jnp.concatenate(
        [x, jnp.sin(x), jnp.cos(x), jnp.sin(2.0 * x), jnp.cos(2.0 * x)],
        axis=0)                                                # (15, TM)

    # Static slices of the packed weight slabs (8-aligned views).
    w1t = w64_ref[0:64, :]            # (64, 64)  W1 padded, rows 49: are 0
    w2at = w64_ref[64:128, :]         # (64, 64)  skip "h" half of W2 / sqrt2
    w3t = w64_ref[128:132, :]         # (4, 64)
    b0 = b_ref[:, 0:1]                # (64, 1)  (cond already folded in)
    b1 = b_ref[:, 1:2]                # (64, 1)  rows 49: are 0
    b2 = b_ref[:, 2:3]                # (64, 1)
    b3 = b_ref[0:4, 3:4]              # (4, 1)

    def dot(a, b):
        return jnp.dot(a, b, preferred_element_type=jnp.float32)

    # One merged K=15 matmul: rows 0:64 -> layer-0 emb contribution,
    # rows 64:128 -> layer-2 skip (emb) contribution (1/sqrt2 pre-folded).
    g = dot(w15_ref[...], emb)                                 # (128, TM)

    # layer 0: LeakyReLU(W0e.T @ emb + (b0 + cond @ W0c))
    h = _leaky_relu(g[0:64, :] + b0)                           # (64, TM)
    # layer 1: LeakyReLU(W1.T @ h + b1); padded rows stay exactly 0
    h = _leaky_relu(dot(w1t, h) + b1)                          # (64, TM)
    # layer 2 (skip): LeakyReLU(((cat([h, emb]) / sqrt2) @ W2).T + b2)
    h = _leaky_relu(dot(w2at, h) + g[64:128, :] + b2)          # (64, TM)
    # layer 3 (output, no activation)
    out_ref[...] = (dot(w3t, h) + b3).astype(out_ref.dtype)    # (4, TM)


# ------------------------------- wrapper ----------------------------------
def vanilla_cond_mlp(coords, cond, params, *, tile_m=2048):
    """coords: (N, DIM_IN) f32, cond: (1, DIM_COND) f32 -> (N, DIM_OUT) f32."""
    W0, b0, W1, b1, W2, b2, W3, b3 = params
    N = coords.shape[0]

    # ---- host-side weight prep (tiny, one-off) ----
    # Fold cond into layer-0 bias: cat([emb, cond]) @ W0 == emb@W0[:15] + cond@W0[15:]
    b0_eff = b0 + (cond @ W0[EMB_DIM:]).reshape(-1)                       # (64,)
    w0t = W0[:EMB_DIM].T                                                  # (64, 15)
    # Pad W1 (64,49) -> (64,64): transposed, rows 49: are zero.
    w1t = jnp.zeros((N_NEURONS, N_NEURONS), jnp.float32).at[:SKIP_OUT, :].set(W1.T)
    b1p = jnp.zeros((N_NEURONS,), jnp.float32).at[:SKIP_OUT].set(b1)
    # Fold the 1/sqrt(2) skip scaling into W2, split into h-half / emb-half.
    W2s = W2 * INV_SQRT2
    w2at = jnp.zeros((N_NEURONS, N_NEURONS), jnp.float32).at[:, :SKIP_OUT].set(W2s[:SKIP_OUT].T)
    w2bt = W2s[SKIP_OUT:].T                                               # (64, 15)
    w3t = W3.T                                                            # (4, 64)
    b3p = jnp.zeros((N_NEURONS,), jnp.float32).at[:DIM_OUT].set(b3)

    # Pack into three slabs (one per lane width) -> 4 kernel inputs total.
    slab_w64 = jnp.concatenate([w1t, w2at, w3t], axis=0)                  # (132, 64)
    slab_w15 = jnp.concatenate([w0t, w2bt], axis=0)                       # (128, 15)
    slab_b = jnp.stack([b0_eff, b1p, b2, b3p], axis=1)                    # (64, 4)

    # ---- points-on-lane layout + ragged-tail padding ----
    n_pad = pl.cdiv(N, tile_m) * tile_m
    x_t = jnp.zeros((DIM_IN, n_pad), jnp.float32).at[:, :N].set(coords.T)

    out_t = pl.pallas_call(
        mlp_kernel,
        out_shape=jax.ShapeDtypeStruct((DIM_OUT, n_pad), jnp.float32),
        grid=(n_pad // tile_m,),
        in_specs=[
            pl.BlockSpec((DIM_IN, tile_m), lambda i: (0, i)),   # coords tile
            pl.BlockSpec(slab_w64.shape, lambda i: (0, 0)),     # constant slabs:
            pl.BlockSpec(slab_w15.shape, lambda i: (0, 0)),     #  DMA'd once
            pl.BlockSpec(slab_b.shape, lambda i: (0, 0)),
        ],
        out_specs=pl.BlockSpec((DIM_OUT, tile_m), lambda i: (0, i)),
        compiler_params=pltpu.CompilerParams(
            dimension_semantics=("parallel",)),
        # NOTE: raise vmem_limit_bytes only if tile_m is pushed well beyond
        # 4096; at 4096 the per-tile footprint is only a few MiB.
    )(x_t, slab_w64, slab_w15, slab_b)

    return out_t[:, :N].T                                       # (N, DIM_OUT)


# ----------------------- reference (pure JAX, for check) -------------------
def reference_forward(coords, cond, params):
    W0, b0, W1, b1, W2, b2, W3, b3 = params
    hp = jax.lax.Precision.HIGHEST

    def lin(x, W, b):
        return jnp.dot(x, W, precision=hp) + b

    emb = jnp.concatenate(
        [coords, jnp.sin(coords), jnp.cos(coords),
         jnp.sin(2.0 * coords), jnp.cos(2.0 * coords)], axis=-1)
    cond_e = jnp.broadcast_to(cond, (coords.shape[0], cond.shape[1]))
    x = jnp.concatenate([emb, cond_e], axis=1)                 # l=0 cond concat
    x = _leaky_relu(lin(x, W0, b0))
    x = _leaky_relu(lin(x, W1, b1))
    x = jnp.concatenate([x, emb], axis=1) / np.sqrt(2.0)       # l=2 skip concat
    x = _leaky_relu(lin(x, W2, b2))
    x = lin(x, W3, b3)                                         # last layer, no act
    return x


# -------------------------------- params -----------------------------------
def init_params(key):
    def linear(key, fan_in, fan_out):
        kw, kb = jax.random.split(key)
        bound = 1.0 / np.sqrt(fan_in)
        W = jax.random.uniform(kw, (fan_in, fan_out), jnp.float32, -bound, bound)
        b = jax.random.uniform(kb, (fan_out,), jnp.float32, -bound, bound)
        return W, b

    k0, k1, k2, k3 = jax.random.split(key, 4)
    W0, b0 = linear(k0, EMB_DIM + DIM_COND, N_NEURONS)   # (23, 64)
    W1, b1 = linear(k1, N_NEURONS, SKIP_OUT)             # (64, 49)
    W2, b2 = linear(k2, N_NEURONS, N_NEURONS)            # (64, 64)
    # last_layer_init=True: normal(std=1e-5) weight, zero bias
    W3 = 1e-5 * jax.random.normal(k3, (N_NEURONS, DIM_OUT), jnp.float32)
    b3 = jnp.zeros((DIM_OUT,), jnp.float32)
    return (W0, b0, W1, b1, W2, b2, W3, b3)


if __name__ == "__main__":
    key = jax.random.PRNGKey(0)
    k_params, k_coords, k_cond = jax.random.split(key, 3)

    params = init_params(k_params)
    N = 1000                                   # intentionally ragged (tests padding)
    coords = jax.random.normal(k_coords, (N, DIM_IN), jnp.float32)
    cond = jax.random.normal(k_cond, (1, DIM_COND), jnp.float32)

    # Small tile for the small demo (grid of 2 so both v7x cores get work);
    # use tile_m=2048..4096 for large point clouds.
    out = vanilla_cond_mlp(coords, cond, params, tile_m=512)
    out = jax.block_until_ready(out)

    ref = reference_forward(coords, cond, params)
    # Output magnitude is ~1e-4 (last_layer_init weights are 1e-5); the
    # tolerance leaves headroom for MXU default-precision rounding while still
    # catching any routing / weight-packing / layout bug (those give >=1e-4
    # errors).
    np.testing.assert_allclose(np.asarray(out), np.asarray(ref),
                               rtol=1e-2, atol=1e-5)
    print("KERNEL_OK")
</pallas_src>

<mosaic_0001>
module attributes {stable_mosaic.version = 11 : i64} {
  func.func @mlp_kernel(%arg0: i32, %arg1: memref<3x512xf32, #tpu.memory_space<vmem>>, %arg2: memref<132x64xf32, #tpu.memory_space<vmem>>, %arg3: memref<128x15xf32, #tpu.memory_space<vmem>>, %arg4: memref<64x4xf32, #tpu.memory_space<vmem>>, %arg5: memref<4x512xf32, #tpu.memory_space<vmem>>) attributes {dimension_semantics = [#tpu.dimension_semantics<parallel>], iteration_bounds = array<i64: 2>, scalar_prefetch = 0 : i64, scratch_operands = 0 : i64, tpu.core_type = #tpu.core_type<tc>, window_params = [{transform_indices = @transform_0, window_bounds = array<i64: 3, 512>}, {pipeline_mode = #tpu.pipeline_mode<synchronous>, transform_indices = @transform_1, window_bounds = array<i64: 132, 64>}, {pipeline_mode = #tpu.pipeline_mode<synchronous>, transform_indices = @transform_2, window_bounds = array<i64: 128, 15>}, {pipeline_mode = #tpu.pipeline_mode<synchronous>, transform_indices = @transform_3, window_bounds = array<i64: 64, 4>}, {transform_indices = @transform_4, window_bounds = array<i64: 4, 512>}]} {
    %c0 = arith.constant 0 : index
    %c0_0 = arith.constant 0 : index
    %0 = vector.load %arg1[%c0, %c0_0] : memref<3x512xf32, #tpu.memory_space<vmem>>, vector<3x512xf32>
    %1 = math.sin %0 : vector<3x512xf32>
    %2 = math.cos %0 : vector<3x512xf32>
    %cst = arith.constant 2.000000e+00 : f32
    %3 = vector.broadcast %cst : f32 to vector<3x512xf32>
    %4 = arith.mulf %3, %0 : vector<3x512xf32>
    %5 = math.sin %4 : vector<3x512xf32>
    %cst_1 = arith.constant 2.000000e+00 : f32
    %6 = vector.broadcast %cst_1 : f32 to vector<3x512xf32>
    %7 = arith.mulf %6, %0 : vector<3x512xf32>
    %8 = math.cos %7 : vector<3x512xf32>
    %9 = tpu.concatenate %0, %1, %2, %5, %8 in 0 : vector<3x512xf32>, vector<3x512xf32>, vector<3x512xf32>, vector<3x512xf32>, vector<3x512xf32> -> vector<15x512xf32>
    %c0_2 = arith.constant 0 : index
    %c0_3 = arith.constant 0 : index
    %10 = vector.load %arg2[%c0_2, %c0_3] : memref<132x64xf32, #tpu.memory_space<vmem>>, vector<64x64xf32>
    %c64 = arith.constant 64 : index
    %c0_4 = arith.constant 0 : index
    %11 = vector.load %arg2[%c64, %c0_4] : memref<132x64xf32, #tpu.memory_space<vmem>>, vector<64x64xf32>
    %c128 = arith.constant 128 : index
    %c0_5 = arith.constant 0 : index
    %12 = vector.load %arg2[%c128, %c0_5] : memref<132x64xf32, #tpu.memory_space<vmem>>, vector<4x64xf32>
    %c0_6 = arith.constant 0 : index
    %c0_7 = arith.constant 0 : index
    %13 = vector.load %arg4[%c0_6, %c0_7] : memref<64x4xf32, #tpu.memory_space<vmem>>, vector<64x1xf32>
    %c0_8 = arith.constant 0 : index
    %c1 = arith.constant 1 : index
    %14 = vector.load %arg4[%c0_8, %c1] : memref<64x4xf32, #tpu.memory_space<vmem>>, vector<64x1xf32>
    %c0_9 = arith.constant 0 : index
    %c2 = arith.constant 2 : index
    %15 = vector.load %arg4[%c0_9, %c2] : memref<64x4xf32, #tpu.memory_space<vmem>>, vector<64x1xf32>
    %c0_10 = arith.constant 0 : index
    %c3 = arith.constant 3 : index
    %16 = vector.load %arg4[%c0_10, %c3] : memref<64x4xf32, #tpu.memory_space<vmem>>, vector<4x1xf32>
    %c0_11 = arith.constant 0 : index
    %c0_12 = arith.constant 0 : index
    %17 = vector.load %arg3[%c0_11, %c0_12] : memref<128x15xf32, #tpu.memory_space<vmem>>, vector<128x15xf32>
    %cst_13 = arith.constant dense<0.000000e+00> : vector<128x512xf32>
    %18 = tpu.matmul %17, %9, %cst_13 {dimension_numbers = #tpu.dot_dimension_numbers<[1], [0], [0], [1], [0, 0, 1, 1], [], []>} : vector<128x15xf32>, vector<15x512xf32>, vector<128x512xf32> -> vector<128x512xf32>
    %19 = vector.extract_strided_slice %18 {offsets = [0, 0], sizes = [64, 512], strides = [1, 1]} : vector<128x512xf32> to vector<64x512xf32>
    %20 = vector.broadcast %13 : vector<64x1xf32> to vector<64x512xf32>
    %21 = arith.addf %19, %20 : vector<64x512xf32>
    %cst_14 = arith.constant 0.000000e+00 : f32
    %22 = vector.broadcast %cst_14 : f32 to vector<64x512xf32>
    %23 = arith.cmpf ogt, %21, %22 : vector<64x512xf32>
    %cst_15 = arith.constant 0.00999999977 : f32
    %24 = vector.broadcast %cst_15 : f32 to vector<64x512xf32>
    %25 = arith.mulf %24, %21 : vector<64x512xf32>
    %26 = arith.select %23, %21, %25 : vector<64x512xi1>, vector<64x512xf32>
    %cst_16 = arith.constant dense<0.000000e+00> : vector<64x512xf32>
    %27 = tpu.matmul %10, %26, %cst_16 {dimension_numbers = #tpu.dot_dimension_numbers<[1], [0], [0], [1], [0, 0, 1, 1], [], []>} : vector<64x64xf32>, vector<64x512xf32>, vector<64x512xf32> -> vector<64x512xf32>
    %28 = vector.broadcast %14 : vector<64x1xf32> to vector<64x512xf32>
    %29 = arith.addf %27, %28 : vector<64x512xf32>
    %cst_17 = arith.constant 0.000000e+00 : f32
    %30 = vector.broadcast %cst_17 : f32 to vector<64x512xf32>
    %31 = arith.cmpf ogt, %29, %30 : vector<64x512xf32>
    %cst_18 = arith.constant 0.00999999977 : f32
    %32 = vector.broadcast %cst_18 : f32 to vector<64x512xf32>
    %33 = arith.mulf %32, %29 : vector<64x512xf32>
    %34 = arith.select %31, %29, %33 : vector<64x512xi1>, vector<64x512xf32>
    %cst_19 = arith.constant dense<0.000000e+00> : vector<64x512xf32>
    %35 = tpu.matmul %11, %34, %cst_19 {dimension_numbers = #tpu.dot_dimension_numbers<[1], [0], [0], [1], [0, 0, 1, 1], [], []>} : vector<64x64xf32>, vector<64x512xf32>, vector<64x512xf32> -> vector<64x512xf32>
    %36 = vector.extract_strided_slice %18 {offsets = [64, 0], sizes = [64, 512], strides = [1, 1]} : vector<128x512xf32> to vector<64x512xf32>
    %37 = arith.addf %35, %36 : vector<64x512xf32>
    %38 = vector.broadcast %15 : vector<64x1xf32> to vector<64x512xf32>
    %39 = arith.addf %37, %38 : vector<64x512xf32>
    %cst_20 = arith.constant 0.000000e+00 : f32
    %40 = vector.broadcast %cst_20 : f32 to vector<64x512xf32>
    %41 = arith.cmpf ogt, %39, %40 : vector<64x512xf32>
    %cst_21 = arith.constant 0.00999999977 : f32
    %42 = vector.broadcast %cst_21 : f32 to vector<64x512xf32>
    %43 = arith.mulf %42, %39 : vector<64x512xf32>
    %44 = arith.select %41, %39, %43 : vector<64x512xi1>, vector<64x512xf32>
    %cst_22 = arith.constant dense<0.000000e+00> : vector<4x512xf32>
    %45 = tpu.matmul %12, %44, %cst_22 {dimension_numbers = #tpu.dot_dimension_numbers<[1], [0], [0], [1], [0, 0, 1, 1], [], []>} : vector<4x64xf32>, vector<64x512xf32>, vector<4x512xf32> -> vector<4x512xf32>
    %46 = vector.broadcast %16 : vector<4x1xf32> to vector<4x512xf32>
    %47 = arith.addf %45, %46 : vector<4x512xf32>
    %c0_23 = arith.constant 0 : index
    %c0_24 = arith.constant 0 : index
    %48 = vector.load %arg5[%c0_23, %c0_24] : memref<4x512xf32, #tpu.memory_space<vmem>>, vector<4x512xf32>
    tpu.vector_store %arg5[%c0_23, %c0_24], %47 {strides = array<i32>} : memref<4x512xf32, #tpu.memory_space<vmem>>, vector<4x512xf32>,
    return
  }
  func.func @transform_0(%arg0: i32) -> (i32, i32) {
    %c0_i32 = arith.constant 0 : i32
    %c0_i32_0 = arith.constant 0 : i32
    return %c0_i32, %arg0 : i32, i32
  }
  func.func @transform_1(%arg0: i32) -> (i32, i32) {
    %c0_i32 = arith.constant 0 : i32
    %c0_i32_0 = arith.constant 0 : i32
    %c0_i32_1 = arith.constant 0 : i32
    return %c0_i32, %c0_i32_0 : i32, i32
  }
  func.func @transform_2(%arg0: i32) -> (i32, i32) {
    %c0_i32 = arith.constant 0 : i32
    %c0_i32_0 = arith.constant 0 : i32
    %c0_i32_1 = arith.constant 0 : i32
    return %c0_i32, %c0_i32_0 : i32, i32
  }
  func.func @transform_3(%arg0: i32) -> (i32, i32) {
    %c0_i32 = arith.constant 0 : i32
    %c0_i32_0 = arith.constant 0 : i32
    %c0_i32_1 = arith.constant 0 : i32
    return %c0_i32, %c0_i32_0 : i32, i32
  }
  func.func @transform_4(%arg0: i32) -> (i32, i32) {
    %c0_i32 = arith.constant 0 : i32
    %c0_i32_0 = arith.constant 0 : i32
    return %c0_i32, %arg0 : i32, i32
  }
}

</mosaic_0001>

<llo_original>
// kernel: tpu_custom_call.1
$region0: #{tpu_custom_call.1}
  #allocation0 [shape = 'u32[]', space=smem, size = 0x4, offset = 0x4, fixed_abs, tag = 'smem constant byte address 0x4 - core index']
  #allocation1 [shape = 'u32[144,128]{1,0:T(1,128)}', space=vmem, size = 0x12000, scoped, tag = 'internal scratch']
  %s0 = inlined_call_operand.vmem [shape: f32[3,1024], index: 0, kind: input, shape index: {}]
  %s1 = inlined_call_operand.vmem [shape: f32[132,64], index: 1, kind: input, shape index: {}]
  %s2 = inlined_call_operand.vmem [shape: f32[128,15], index: 2, kind: input, shape index: {}]
  %s3 = inlined_call_operand.vmem [shape: f32[64,4], index: 3, kind: input, shape index: {}]
  %s4 = inlined_call_operand.hbm [shape: f32[4,1024], index: 4, kind: output, shape index: {}]
  %s5 = sld [smem:[#allocation0]]
  $region49: #{tpu_custom_call.1} parent=0
    _
  %s7 = ssub.s32 1, %s5
  %s8 = scalar_select 0, %s7, %s5
  $region1: #{tpu_custom_call.1} parent=0
    #allocation2 [shape = 'u8[16384]{0}', space=vmem, size = 0x4000, scoped, tag = 'output window, operand 0']
    #allocation3 [shape = 's32[2]{0}', space=sflag, size = 0x8, scoped, tag = 'scoped memory for tpu_custom_call.1']
    %9 = vsyncpa [#allocation3], 0
    %s10 = scalar_lea.sflag [#allocation3], 1
    %11 = vsyncpa %s10, 0
    loop: start=0, step=1, limit=4
    $region2: #{tpu_custom_call.1} parent=1 // loop_pre_header
      _
    $region3: #{tpu_custom_call.1} parent=1 // loop_header
      %s13 = sphi 0, %s17
      %p14 = scmp.ge.s32.totalorder %s13, 4
      %s23 = sphi 0, %s25
      %s26 = sphi 0, %s23
      %s27 = sphi 0, %s26
      %s43 = sphi 0, %s27
      %s47 = sphi 0, %s47
      %s49 = sphi 0, %s47
      %s50 = sphi 0, %s49
      %s64 = sphi 0, %s50
      %s68 = sphi 0, %s68
      %s70 = sphi 0, %s68
      %s71 = sphi 0, %s70
      %s85 = sphi 0, %s71
      %s89 = sphi 0, %s89
      %s91 = sphi 0, %s89
      %s92 = sphi 0, %s91
      %s106 = sphi 0, %s92
      %s112 = sphi 0, %s114
      %s115 = sphi 0, %s112
      %s116 = sphi 0, %s115
      %s132 = sphi 0, %s116
    $region4: #{tpu_custom_call.1} parent=1 // loop_header_branch
      %16 = sbr.rel (%p14) target = $region8
    $region5: #{tpu_custom_call.1} parent=1 // loop_body
      %s18 = ssub.s32 %s13, 1
      %s19 = ssub.s32 %s13, 2
      %s20 = sadd.s32 %s13, 1
      %s21 = ssub.s32 %s13, %s20
      %p22 = scmp.eq.s32.totalorder %s21, 0
      %s24 = sadd.s32 %s23, 1
      %s25 = scalar_select %p22, %s23, %s24
      %p28 = pneg %p22
      %p29 = scmp.eq.s32.totalorder %s13, 1
      %p30 = por %p28, %p29
      %p31 = scmp.ne.s32.totalorder %s23, %s26
      %p32 = scmp.eq.s32.totalorder %s13, 0
      %p33 = por %p31, %p32
      %p34 = scmp.ne.s32.totalorder %s23, %s26
      %p35 = scmp.eq.s32.totalorder %s18, 1
      %p36 = por %p34, %p35
      %p37 = scmp.ne.s32.totalorder %s26, %s27
      %p38 = scmp.eq.s32.totalorder %s18, 0
      %p39 = por %p37, %p38
      %p40 = scmp.ne.s32.totalorder %s26, %s27
      %p41 = scmp.eq.s32.totalorder %s19, 1
      %p42 = por %p40, %p41
      %p44 = scmp.ne.s32.totalorder %s27, %s43
      %p45 = scmp.eq.s32.totalorder %s19, 0
      %p46 = por %p44, %p45
      %s48 = sadd.s32 %s47, 1
      %p51 = scmp.eq.s32.totalorder %s13, 1
      %p52 = scmp.ne.s32.totalorder %s47, %s49
      %p53 = scmp.eq.s32.totalorder %s13, 0
      %p54 = por %p52, %p53
      %p55 = scmp.ne.s32.totalorder %s47, %s49
      %p56 = scmp.eq.s32.totalorder %s18, 1
      %p57 = por %p55, %p56
      %p58 = scmp.ne.s32.totalorder %s49, %s50
      %p59 = scmp.eq.s32.totalorder %s18, 0
      %p60 = por %p58, %p59
      %p61 = scmp.ne.s32.totalorder %s49, %s50
      %p62 = scmp.eq.s32.totalorder %s19, 1
      %p63 = por %p61, %p62
      %p65 = scmp.ne.s32.totalorder %s50, %s64
      %p66 = scmp.eq.s32.totalorder %s19, 0
      %p67 = por %p65, %p66
      %s69 = sadd.s32 %s68, 1
      %p72 = scmp.eq.s32.totalorder %s13, 1
      %p73 = scmp.ne.s32.totalorder %s68, %s70
      %p74 = scmp.eq.s32.totalorder %s13, 0
      %p75 = por %p73, %p74
      %p76 = scmp.ne.s32.totalorder %s68, %s70
      %p77 = scmp.eq.s32.totalorder %s18, 1
      %p78 = por %p76, %p77
      %p79 = scmp.ne.s32.totalorder %s70, %s71
      %p80 = scmp.eq.s32.totalorder %s18, 0
      %p81 = por %p79, %p80
      %p82 = scmp.ne.s32.totalorder %s70, %s71
      %p83 = scmp.eq.s32.totalorder %s19, 1
      %p84 = por %p82, %p83
      %p86 = scmp.ne.s32.totalorder %s71, %s85
      %p87 = scmp.eq.s32.totalorder %s19, 0
      %p88 = por %p86, %p87
      %s90 = sadd.s32 %s89, 1
      %p93 = scmp.eq.s32.totalorder %s13, 1
      %p94 = scmp.ne.s32.totalorder %s89, %s91
      %p95 = scmp.eq.s32.totalorder %s13, 0
      %p96 = por %p94, %p95
      %p97 = scmp.ne.s32.totalorder %s89, %s91
      %p98 = scmp.eq.s32.totalorder %s18, 1
      %p99 = por %p97, %p98
      %p100 = scmp.ne.s32.totalorder %s91, %s92
      %p101 = scmp.eq.s32.totalorder %s18, 0
      %p102 = por %p100, %p101
      %p103 = scmp.ne.s32.totalorder %s91, %s92
      %p104 = scmp.eq.s32.totalorder %s19, 1
      %p105 = por %p103, %p104
      %p107 = scmp.ne.s32.totalorder %s92, %s106
      %p108 = scmp.eq.s32.totalorder %s19, 0
      %p109 = por %p107, %p108
      %s110 = ssub.s32 %s13, %s20
      %p111 = scmp.eq.s32.totalorder %s110, 0
      %s113 = sadd.s32 %s112, 1
      %s114 = scalar_select %p111, %s112, %s113
      %p117 = pneg %p111
      %p118 = scmp.eq.s32.totalorder %s13, 1
      %p119 = por %p117, %p118
      %p120 = scmp.ne.s32.totalorder %s112, %s115
      %p121 = scmp.eq.s32.totalorder %s13, 0
      %p122 = por %p120, %p121
      %p123 = scmp.ne.s32.totalorder %s112, %s115
      %p124 = scmp.eq.s32.totalorder %s18, 1
      %p125 = por %p123, %p124
      %p126 = scmp.ne.s32.totalorder %s115, %s116
      %p127 = scmp.eq.s32.totalorder %s18, 0
      %p128 = por %p126, %p127
      %p129 = scmp.ne.s32.totalorder %s115, %s116
      %p130 = scmp.eq.s32.totalorder %s19, 1
      %p131 = por %p129, %p130
      %p133 = scmp.ne.s32.totalorder %s116, %s132
      %p134 = scmp.eq.s32.totalorder %s19, 0
      %p135 = por %p133, %p134
      %p136 = scmp.le.s32.totalorder 1, %s13
      %p137 = scmp.lt.s32.totalorder %s13, 3
      %p138 = pnand %p136, %p137
      %p139 = pneg %p138
      // Predicated region
      $region9: #{tpu_custom_call.1} parent=5 // pred_check
        _
      $region10: #{tpu_custom_call.1} parent=5 // pred_check_branch
        %141 = sbr.rel (%p138) target = $region12
      $region11: #{tpu_custom_call.1} parent=5 // pred_region
        %s142 = ssub.s32 %s13, 1
        // Predicated region
        $region13: #{tpu_custom_call.1} parent=11 // pred_check
          %p143 = pneg %p60
        $region14: #{tpu_custom_call.1} parent=11 // pred_check_branch
          %145 = sbr.rel (%p143) target = $region16
        $region15: #{tpu_custom_call.1} parent=11 // pred_region
          _
        $region16: #{tpu_custom_call.1} parent=11 // pred_fallthru
          _
        // Predicated region
        $region17: #{tpu_custom_call.1} parent=11 // pred_check
          %p146 = pneg %p81
        $region18: #{tpu_custom_call.1} parent=11 // pred_check_branch
          %148 = sbr.rel (%p146) target = $region20
        $region19: #{tpu_custom_call.1} parent=11 // pred_region
          _
        $region20: #{tpu_custom_call.1} parent=11 // pred_fallthru
          _
        // Predicated region
        $region21: #{tpu_custom_call.1} parent=11 // pred_check
          %p149 = pneg %p102
        $region22: #{tpu_custom_call.1} parent=11 // pred_check_branch
          %151 = sbr.rel (%p149) target = $region24
        $region23: #{tpu_custom_call.1} parent=11 // pred_region
          _
        $region24: #{tpu_custom_call.1} parent=11 // pred_fallthru
          _
      $region12: #{tpu_custom_call.1} parent=5 // pred_fallthru
        _
      %p152 = scmp.lt.s32.totalorder %s13, 2
      // Predicated region
      $region25: #{tpu_custom_call.1} parent=5 // pred_check
        %p153 = pneg %p152
      $region26: #{tpu_custom_call.1} parent=5 // pred_check_branch
        %155 = sbr.rel (%p153) target = $region28
      $region27: #{tpu_custom_call.1} parent=5 // pred_region
        // Predicated region
        $region29: #{tpu_custom_call.1} parent=27 // pred_check
          %p156 = pneg %p33
        $region30: #{tpu_custom_call.1} parent=27 // pred_check_branch
          %158 = sbr.rel (%p156) target = $region32
        $region31: #{tpu_custom_call.1} parent=27 // pred_region
          %s159 = smul.u32 4, %s13
          %p160 = scmp.lt.s32.totalorder %s159, 7
          %s161 = scalar_select %p160, %s159, 7
          %s162 = smul.addr %s161, 4
          %s163 = scalar_lea.vmem %s0, %s162
          %s164 = smul.u32 4, %s13
        $region32: #{tpu_custom_call.1} parent=27 // pred_fallthru
          _
      $region28: #{tpu_custom_call.1} parent=5 // pred_fallthru
        _
      %p165 = scmp.le.s32.totalorder 1, %s13
      %p166 = scmp.lt.s32.totalorder %s13, 3
      %p167 = pnand %p165, %p166
      %p168 = pneg %p167
      // Predicated region
      $region33: #{tpu_custom_call.1} parent=5 // pred_check
        _
      $region34: #{tpu_custom_call.1} parent=5 // pred_check_branch
        %170 = sbr.rel (%p167) target = $region36
      $region35: #{tpu_custom_call.1} parent=5 // pred_region
        %s171 = ssub.s32 %s13, 1
        %s172 = smul.u32 4, %s18
        %p173 = scmp.lt.s32.totalorder %s172, 7
        %s174 = scalar_select %p173, %s172, 7
        %s175 = smul.addr %s174, 4
        %s176 = scalar_lea.vmem %s0, %s175
        %p177 = pneg %p39
        %p178 = pneg %p36
        %p179 = pneg %p60
        %p180 = pneg %p57
        %p181 = pneg %p81
        %p182 = pneg %p78
        %p183 = pneg %p102
        %p184 = pneg %p99
        %p185 = pneg %p128
        %p186 = pneg %p125
        %s187 = sand.u32 %s115, 1
        %s188 = scalar_lea.sflag [#allocation3], %s187
        %s189 = sand.u32 %s115, 1
        %s190 = smul.addr %s189, 16
        %s191 = scalar_lea.vmem [#allocation2], %s190
        %s192 = smul.u32 4, %s18
        %p193 = scmp.lt.s32.totalorder %s192, 7
        %s194 = scalar_select %p193, %s192, 7
        %s195 = smul.addr %s194, 4
        %s196 = scalar_lea.vmem %s0, %s195
        %s197 = smul.u32 4, %s18
        %s198 = smul.u32 4, %s18
        %v199 = vld [vmem:[%s196] sm:$0x77]
        %v200 = vld [vmem:[%s196 + $0x8] sm:$0x77]
        %v201 = vand.u32 2147483647, %v199
        %vm202 = vcmp.le.f32.partialorder %v201, 0.7853982
        %vm203 = vcmp.lt.s32.totalorder %v199, 0
        %v204 = vand.u32 %v199, 2139095040
        %v205 = vshrl.u32 %v204, 23
        %v206 = vsub.s32 %v205, 127
        %v207 = vand.u32 2147483647, %v199
        %v208 = vand.u32 %v207, 8388607
        %v209 = vor.u32 %v208, 8388608
        %v210 = vsub.s32 0, %v209
        %v211 = vadd.s32 %v206, 1
        %vm212 = vcmp.gt.s32.totalorder %v211, 0
        %v213 = vsel %vm212, %v211, 0
        %v214 = vshrl.u32 %v213, 5
        %v215 = vand.u32 %v213, 31
        %v216 = vsub.s32 32, %v215
        %v217 = vshrl.u32 683565275, %v216
        %v218 = vshll.u32 683565275, %v215
        %v219 = vshrl.u32 2475754826, %v216
        %v220 = vor.u32 %v218, %v219
        %v221 = vshll.u32 2475754826, %v215
        %v222 = vshrl.u32 2131351028, %v216
        %v223 = vor.u32 %v221, %v222
        %v224 = vshll.u32 2131351028, %v215
        %v225 = vshrl.u32 2102212464, %v216
        %v226 = vor.u32 %v224, %v225
        %v227 = vshll.u32 2102212464, %v215
        %v228 = vshrl.u32 920167782, %v216
        %v229 = vor.u32 %v227, %v228
        %v230 = vshll.u32 920167782, %v215
        %v231 = vshrl.u32 1326507024, %v216
        %v232 = vor.u32 %v230, %v231
        %vm233 = vcmp.lt.s32.totalorder %v214, 1
        %vm234 = vcmp.lt.s32.totalorder %v214, 2
        %vm235 = vcmp.lt.s32.totalorder %v214, 3
        %vm236 = vcmp.lt.s32.totalorder %v214, 4
        %v237 = vsel %vm233, %v217, %v220
        %v238 = vsel %vm236, %v226, 2102212464
        %v239 = vsel %vm235, %v223, %v238
        %v240 = vsel %vm234, %v237, %v239
        %v241 = vsel %vm233, %v220, %v223
        %v242 = vsel %vm236, %v229, 920167782
        %v243 = vsel %vm235, %v226, %v242
        %v244 = vsel %vm234, %v241, %v243
        %v245 = vsel %vm233, %v223, %v226
        %v246 = vsel %vm236, %v232, 1326507024
        %v247 = vsel %vm235, %v229, %v246
        %v248 = vsel %vm234, %v245, %v247
        %v249 = vshll.u32 %v209, 8
        %v250 = vmul.u32.u64.compose %v249, %v248
        %v251 = vextract.low.u32 %v250
        %v252 = vextract.high.u32 %v250
        %v253 = vmul.u32.u64.compose %v249, %v244
        %v254 = vextract.low.u32 %v253
        %v255 = vextract.high.u32 %v253
        %v256 = vmul.u32 %v249, %v240
        %v257 = vadd.s32 %v252, %v254
        %vm258 = vc.u32 %v252, %v254
        %v259 = vadd.s32 %v255, 1
        %v260 = vsel %vm258, %v259, %v255
        %v261 = vadd.s32 %v256, %v260
        %v262 = vadd.s32 %v261, 536870912
        %v263 = vshrl.u32 %v262, 30
        %v264 = vshll.u32 %v263, 30
        %v265 = vsub.s32 %v261, %v264
        %vm266 = vcmp.lt.s32.totalorder %v265, 0
        %v267 = vsub.s32 0, %v265
        %v268 = vsel %vm266, %v267, %v265
        %v269 = vclz %v268
        %v270 = vsub.s32 %v269, 2
        %vm271 = vcmp.gt.s32.totalorder 0, %v270
        %v272 = vsel %vm271, 0, %v270
        %v273 = vsub.s32 32, %v272
        %v274 = vshll.u32 %v265, %v272
        %v275 = vshrl.u32 %v257, %v273
        %v276 = vor.u32 %v274, %v275
        %v277 = vsub.s32 4294967266, %v272
        %v278 = vadd.s32 %v277, 127
        %v279 = vshll.u32 %v278, 23
        %v280 = vor.u32 4788187, %v279
        %v281 = vand.u32 2147483647, %v280
        %v283 = vcvt.s32.f32 %v276
        %v284 = vmul.f32 %v283, %v281
        %v285 = vxor.u32 %v284, 2147483648
        %v286 = vsel %vm203, %v285, %v284
        %v287 = vsub.s32 4, %v263
        %v288 = vsel %vm203, %v287, %v263
        %v289 = vsel %vm202, %v199, %v286
        %v290 = vsel %vm202, 0, %v288
        %v291 = vcosq.f32.pop %v289
        %v292 = vsinq.f32.pop %v289
        %vm293 = vweird.f32 %v199
        %v294 = vadd.s32 %v290, 3
        %v295 = vand.u32 %v294, 3
        %vm296 = vcmp.lt.s32.totalorder %v295, 2
        %vm297 = vcmp.eq.s32.totalorder %v295, 0
        %v298 = vxor.u32 %v292, 2147483648
        %v299 = vsel %vm297, %v291, %v298
        %vm300 = vcmp.eq.s32.totalorder %v295, 2
        %v301 = vxor.u32 %v291, 2147483648
        %v302 = vsel %vm300, %v301, %v292
        %v303 = vsel %vm296, %v299, %v302
        %v304 = vsel %vm293, nan, %v303
        %v305 = vand.u32 2147483647, %v200
        %vm306 = vcmp.le.f32.partialorder %v305, 0.7853982
        %vm307 = vcmp.lt.s32.totalorder %v200, 0
        %v308 = vand.u32 %v200, 2139095040
        %v309 = vshrl.u32 %v308, 23
        %v310 = vsub.s32 %v309, 127
        %v311 = vand.u32 2147483647, %v200
        %v312 = vand.u32 %v311, 8388607
        %v313 = vor.u32 %v312, 8388608
        %v314 = vsub.s32 0, %v313
        %v315 = vadd.s32 %v310, 1
        %vm316 = vcmp.gt.s32.totalorder %v315, 0
        %v317 = vsel %vm316, %v315, 0
        %v318 = vshrl.u32 %v317, 5
        %v319 = vand.u32 %v317, 31
        %v320 = vsub.s32 32, %v319
        %v321 = vshrl.u32 683565275, %v320
        %v322 = vshll.u32 683565275, %v319
        %v323 = vshrl.u32 2475754826, %v320
        %v324 = vor.u32 %v322, %v323
        %v325 = vshll.u32 2475754826, %v319
        %v326 = vshrl.u32 2131351028, %v320
        %v327 = vor.u32 %v325, %v326
        %v328 = vshll.u32 2131351028, %v319
        %v329 = vshrl.u32 2102212464, %v320
        %v330 = vor.u32 %v328, %v329
        %v331 = vshll.u32 2102212464, %v319
        %v332 = vshrl.u32 920167782, %v320
        %v333 = vor.u32 %v331, %v332
        %v334 = vshll.u32 920167782, %v319
        %v335 = vshrl.u32 1326507024, %v320
        %v336 = vor.u32 %v334, %v335
        %vm337 = vcmp.lt.s32.totalorder %v318, 1
        %vm338 = vcmp.lt.s32.totalorder %v318, 2
        %vm339 = vcmp.lt.s32.totalorder %v318, 3
        %vm340 = vcmp.lt.s32.totalorder %v318, 4
        %v341 = vsel %vm337, %v321, %v324
        %v342 = vsel %vm340, %v330, 2102212464
        %v343 = vsel %vm339, %v327, %v342
        %v344 = vsel %vm338, %v341, %v343
        %v345 = vsel %vm337, %v324, %v327
        %v346 = vsel %vm340, %v333, 920167782
        %v347 = vsel %vm339, %v330, %v346
        %v348 = vsel %vm338, %v345, %v347
        %v349 = vsel %vm337, %v327, %v330
        %v350 = vsel %vm340, %v336, 1326507024
        %v351 = vsel %vm339, %v333, %v350
        %v352 = vsel %vm338, %v349, %v351
        %v353 = vshll.u32 %v313, 8
        %v354 = vmul.u32.u64.compose %v353, %v352
        %v355 = vextract.low.u32 %v354
        %v356 = vextract.high.u32 %v354
        %v357 = vmul.u32.u64.compose %v353, %v348
        %v358 = vextract.low.u32 %v357
        %v359 = vextract.high.u32 %v357
        %v360 = vmul.u32 %v353, %v344
        %v361 = vadd.s32 %v356, %v358
        %vm362 = vc.u32 %v356, %v358
        %v363 = vadd.s32 %v359, 1
        %v364 = vsel %vm362, %v363, %v359
        %v365 = vadd.s32 %v360, %v364
        %v366 = vadd.s32 %v365, 536870912
        %v367 = vshrl.u32 %v366, 30
        %v368 = vshll.u32 %v367, 30
        %v369 = vsub.s32 %v365, %v368
        %vm370 = vcmp.lt.s32.totalorder %v369, 0
        %v371 = vsub.s32 0, %v369
        %v372 = vsel %vm370, %v371, %v369
        %v373 = vclz %v372
        %v374 = vsub.s32 %v373, 2
        %vm375 = vcmp.gt.s32.totalorder 0, %v374
        %v376 = vsel %vm375, 0, %v374
        %v377 = vsub.s32 32, %v376
        %v378 = vshll.u32 %v369, %v376
        %v379 = vshrl.u32 %v361, %v377
        %v380 = vor.u32 %v378, %v379
        %v381 = vsub.s32 4294967266, %v376
        %v382 = vadd.s32 %v381, 127
        %v383 = vshll.u32 %v382, 23
        %v384 = vor.u32 4788187, %v383
        %v385 = vand.u32 2147483647, %v384
        %v387 = vcvt.s32.f32 %v380
        %v388 = vmul.f32 %v387, %v385
        %v389 = vxor.u32 %v388, 2147483648
        %v390 = vsel %vm307, %v389, %v388
        %v391 = vsub.s32 4, %v367
        %v392 = vsel %vm307, %v391, %v367
        %v393 = vsel %vm306, %v200, %v390
        %v394 = vsel %vm306, 0, %v392
        %v395 = vcosq.f32.pop %v393
        %v396 = vsinq.f32.pop %v393
        %vm397 = vweird.f32 %v200
        %v398 = vadd.s32 %v394, 3
        %v399 = vand.u32 %v398, 3
        %vm400 = vcmp.lt.s32.totalorder %v399, 2
        %vm401 = vcmp.eq.s32.totalorder %v399, 0
        %v402 = vxor.u32 %v396, 2147483648
        %v403 = vsel %vm401, %v395, %v402
        %vm404 = vcmp.eq.s32.totalorder %v399, 2
        %v405 = vxor.u32 %v395, 2147483648
        %v406 = vsel %vm404, %v405, %v396
        %v407 = vsel %vm400, %v403, %v406
        %v408 = vsel %vm397, nan, %v407
        %v409 = vand.u32 2147483647, %v199
        %vm410 = vcmp.le.f32.partialorder %v409, 0.7853982
        %vm411 = vcmp.lt.s32.totalorder %v199, 0
        %v412 = vand.u32 %v199, 2139095040
        %v413 = vshrl.u32 %v412, 23
        %v414 = vsub.s32 %v413, 127
        %v415 = vand.u32 2147483647, %v199
        %v416 = vand.u32 %v415, 8388607
        %v417 = vor.u32 %v416, 8388608
        %v418 = vsub.s32 0, %v417
        %v419 = vadd.s32 %v414, 1
        %vm420 = vcmp.gt.s32.totalorder %v419, 0
        %v421 = vsel %vm420, %v419, 0
        %v422 = vshrl.u32 %v421, 5
        %v423 = vand.u32 %v421, 31
        %v424 = vsub.s32 32, %v423
        %v425 = vshrl.u32 683565275, %v424
        %v426 = vshll.u32 683565275, %v423
        %v427 = vshrl.u32 2475754826, %v424
        %v428 = vor.u32 %v426, %v427
        %v429 = vshll.u32 2475754826, %v423
        %v430 = vshrl.u32 2131351028, %v424
        %v431 = vor.u32 %v429, %v430
        %v432 = vshll.u32 2131351028, %v423
        %v433 = vshrl.u32 2102212464, %v424
        %v434 = vor.u32 %v432, %v433
        %v435 = vshll.u32 2102212464, %v423
        %v436 = vshrl.u32 920167782, %v424
        %v437 = vor.u32 %v435, %v436
        %v438 = vshll.u32 920167782, %v423
        %v439 = vshrl.u32 1326507024, %v424
        %v440 = vor.u32 %v438, %v439
        %vm441 = vcmp.lt.s32.totalorder %v422, 1
        %vm442 = vcmp.lt.s32.totalorder %v422, 2
        %vm443 = vcmp.lt.s32.totalorder %v422, 3
        %vm444 = vcmp.lt.s32.totalorder %v422, 4
        %v445 = vsel %vm441, %v425, %v428
        %v446 = vsel %vm444, %v434, 2102212464
        %v447 = vsel %vm443, %v431, %v446
        %v448 = vsel %vm442, %v445, %v447
        %v449 = vsel %vm441, %v428, %v431
        %v450 = vsel %vm444, %v437, 920167782
        %v451 = vsel %vm443, %v434, %v450
        %v452 = vsel %vm442, %v449, %v451
        %v453 = vsel %vm441, %v431, %v434
        %v454 = vsel %vm444, %v440, 1326507024
        %v455 = vsel %vm443, %v437, %v454
        %v456 = vsel %vm442, %v453, %v455
        %v457 = vshll.u32 %v417, 8
        %v458 = vmul.u32.u64.compose %v457, %v456
        %v459 = vextract.low.u32 %v458
        %v460 = vextract.high.u32 %v458
        %v461 = vmul.u32.u64.compose %v457, %v452
        %v462 = vextract.low.u32 %v461
        %v463 = vextract.high.u32 %v461
        %v464 = vmul.u32 %v457, %v448
        %v465 = vadd.s32 %v460, %v462
        %vm466 = vc.u32 %v460, %v462
        %v467 = vadd.s32 %v463, 1
        %v468 = vsel %vm466, %v467, %v463
        %v469 = vadd.s32 %v464, %v468
        %v470 = vadd.s32 %v469, 536870912
        %v471 = vshrl.u32 %v470, 30
        %v472 = vshll.u32 %v471, 30
        %v473 = vsub.s32 %v469, %v472
        %vm474 = vcmp.lt.s32.totalorder %v473, 0
        %v475 = vsub.s32 0, %v473
        %v476 = vsel %vm474, %v475, %v473
        %v477 = vclz %v476
        %v478 = vsub.s32 %v477, 2
        %vm479 = vcmp.gt.s32.totalorder 0, %v478
        %v480 = vsel %vm479, 0, %v478
        %v481 = vsub.s32 32, %v480
        %v482 = vshll.u32 %v473, %v480
        %v483 = vshrl.u32 %v465, %v481
        %v484 = vor.u32 %v482, %v483
        %v485 = vsub.s32 4294967266, %v480
        %v486 = vadd.s32 %v485, 127
        %v487 = vshll.u32 %v486, 23
        %v488 = vor.u32 4788187, %v487
        %v489 = vand.u32 2147483647, %v488
        %v491 = vcvt.s32.f32 %v484
        %v492 = vmul.f32 %v491, %v489
        %v493 = vxor.u32 %v492, 2147483648
        %v494 = vsel %vm411, %v493, %v492
        %v495 = vsub.s32 4, %v471
        %v496 = vsel %vm411, %v495, %v471
        %v497 = vsel %vm410, %v199, %v494
        %v498 = vsel %vm410, 0, %v496
        %v499 = vcosq.f32.pop %v497
        %v500 = vsinq.f32.pop %v497
        %vm501 = vweird.f32 %v199
        %v502 = vand.u32 %v498, 3
        %vm503 = vcmp.lt.s32.totalorder %v502, 2
        %vm504 = vcmp.eq.s32.totalorder %v502, 0
        %v505 = vxor.u32 %v500, 2147483648
        %v506 = vsel %vm504, %v499, %v505
        %vm507 = vcmp.eq.s32.totalorder %v502, 2
        %v508 = vxor.u32 %v499, 2147483648
        %v509 = vsel %vm507, %v508, %v500
        %v510 = vsel %vm503, %v506, %v509
        %v511 = vsel %vm501, nan, %v510
        %v512 = vand.u32 2147483647, %v200
        %vm513 = vcmp.le.f32.partialorder %v512, 0.7853982
        %vm514 = vcmp.lt.s32.totalorder %v200, 0
        %v515 = vand.u32 %v200, 2139095040
        %v516 = vshrl.u32 %v515, 23
        %v517 = vsub.s32 %v516, 127
        %v518 = vand.u32 2147483647, %v200
        %v519 = vand.u32 %v518, 8388607
        %v520 = vor.u32 %v519, 8388608
        %v521 = vsub.s32 0, %v520
        %v522 = vadd.s32 %v517, 1
        %vm523 = vcmp.gt.s32.totalorder %v522, 0
        %v524 = vsel %vm523, %v522, 0
        %v525 = vshrl.u32 %v524, 5
        %v526 = vand.u32 %v524, 31
        %v527 = vsub.s32 32, %v526
        %v528 = vshrl.u32 683565275, %v527
        %v529 = vshll.u32 683565275, %v526
        %v530 = vshrl.u32 2475754826, %v527
        %v531 = vor.u32 %v529, %v530
        %v532 = vshll.u32 2475754826, %v526
        %v533 = vshrl.u32 2131351028, %v527
        %v534 = vor.u32 %v532, %v533
        %v535 = vshll.u32 2131351028, %v526
        %v536 = vshrl.u32 2102212464, %v527
        %v537 = vor.u32 %v535, %v536
        %v538 = vshll.u32 2102212464, %v526
        %v539 = vshrl.u32 920167782, %v527
        %v540 = vor.u32 %v538, %v539
        %v541 = vshll.u32 920167782, %v526
        %v542 = vshrl.u32 1326507024, %v527
        %v543 = vor.u32 %v541, %v542
        %vm544 = vcmp.lt.s32.totalorder %v525, 1
        %vm545 = vcmp.lt.s32.totalorder %v525, 2
        %vm546 = vcmp.lt.s32.totalorder %v525, 3
        %vm547 = vcmp.lt.s32.totalorder %v525, 4
        %v548 = vsel %vm544, %v528, %v531
        %v549 = vsel %vm547, %v537, 2102212464
        %v550 = vsel %vm546, %v534, %v549
        %v551 = vsel %vm545, %v548, %v550
        %v552 = vsel %vm544, %v531, %v534
        %v553 = vsel %vm547, %v540, 920167782
        %v554 = vsel %vm546, %v537, %v553
        %v555 = vsel %vm545, %v552, %v554
        %v556 = vsel %vm544, %v534, %v537
        %v557 = vsel %vm547, %v543, 1326507024
        %v558 = vsel %vm546, %v540, %v557
        %v559 = vsel %vm545, %v556, %v558
        %v560 = vshll.u32 %v520, 8
        %v561 = vmul.u32.u64.compose %v560, %v559
        %v562 = vextract.low.u32 %v561
        %v563 = vextract.high.u32 %v561
        %v564 = vmul.u32.u64.compose %v560, %v555
        %v565 = vextract.low.u32 %v564
        %v566 = vextract.high.u32 %v564
        %v567 = vmul.u32 %v560, %v551
        %v568 = vadd.s32 %v563, %v565
        %vm569 = vc.u32 %v563, %v565
        %v570 = vadd.s32 %v566, 1
        %v571 = vsel %vm569, %v570, %v566
        %v572 = vadd.s32 %v567, %v571
        %v573 = vadd.s32 %v572, 536870912
        %v574 = vshrl.u32 %v573, 30
        %v575 = vshll.u32 %v574, 30
        %v576 = vsub.s32 %v572, %v575
        %vm577 = vcmp.lt.s32.totalorder %v576, 0
        %v578 = vsub.s32 0, %v576
        %v579 = vsel %vm577, %v578, %v576
        %v580 = vclz %v579
        %v581 = vsub.s32 %v580, 2
        %vm582 = vcmp.gt.s32.totalorder 0, %v581
        %v583 = vsel %vm582, 0, %v581
        %v584 = vsub.s32 32, %v583
        %v585 = vshll.u32 %v576, %v583
        %v586 = vshrl.u32 %v568, %v584
        %v587 = vor.u32 %v585, %v586
        %v588 = vsub.s32 4294967266, %v583
        %v589 = vadd.s32 %v588, 127
        %v590 = vshll.u32 %v589, 23
        %v591 = vor.u32 4788187, %v590
        %v592 = vand.u32 2147483647, %v591
        %v594 = vcvt.s32.f32 %v587
        %v595 = vmul.f32 %v594, %v592
        %v596 = vxor.u32 %v595, 2147483648
        %v597 = vsel %vm514, %v596, %v595
        %v598 = vsub.s32 4, %v574
        %v599 = vsel %vm514, %v598, %v574
        %v600 = vsel %vm513, %v200, %v597
        %v601 = vsel %vm513, 0, %v599
        %v602 = vcosq.f32.pop %v600
        %v603 = vsinq.f32.pop %v600
        %vm604 = vweird.f32 %v200
        %v605 = vand.u32 %v601, 3
        %vm606 = vcmp.lt.s32.totalorder %v605, 2
        %vm607 = vcmp.eq.s32.totalorder %v605, 0
        %v608 = vxor.u32 %v603, 2147483648
        %v609 = vsel %vm607, %v602, %v608
        %vm610 = vcmp.eq.s32.totalorder %v605, 2
        %v611 = vxor.u32 %v602, 2147483648
        %v612 = vsel %vm610, %v611, %v603
        %v613 = vsel %vm606, %v609, %v612
        %v614 = vsel %vm604, nan, %v613
        %v615 = vmul.f32 %v199, 2.0
        %v616 = vmul.f32 %v200, 2.0
        %v617 = vand.u32 2147483647, %v615
        %vm618 = vcmp.le.f32.partialorder %v617, 0.7853982
        %vm619 = vcmp.lt.s32.totalorder %v615, 0
        %v620 = vand.u32 %v615, 2139095040
        %v621 = vshrl.u32 %v620, 23
        %v622 = vsub.s32 %v621, 127
        %v623 = vand.u32 2147483647, %v615
        %v624 = vand.u32 %v623, 8388607
        %v625 = vor.u32 %v624, 8388608
        %v626 = vsub.s32 0, %v625
        %v627 = vadd.s32 %v622, 1
        %vm628 = vcmp.gt.s32.totalorder %v627, 0
        %v629 = vsel %vm628, %v627, 0
        %v630 = vshrl.u32 %v629, 5
        %v631 = vand.u32 %v629, 31
        %v632 = vsub.s32 32, %v631
        %v633 = vshrl.u32 683565275, %v632
        %v634 = vshll.u32 683565275, %v631
        %v635 = vshrl.u32 2475754826, %v632
        %v636 = vor.u32 %v634, %v635
        %v637 = vshll.u32 2475754826, %v631
        %v638 = vshrl.u32 2131351028, %v632
        %v639 = vor.u32 %v637, %v638
        %v640 = vshll.u32 2131351028, %v631
        %v641 = vshrl.u32 2102212464, %v632
        %v642 = vor.u32 %v640, %v641
        %v643 = vshll.u32 2102212464, %v631
        %v644 = vshrl.u32 920167782, %v632
        %v645 = vor.u32 %v643, %v644
        %v646 = vshll.u32 920167782, %v631
        %v647 = vshrl.u32 1326507024, %v632
        %v648 = vor.u32 %v646, %v647
        %vm649 = vcmp.lt.s32.totalorder %v630, 1
        %vm650 = vcmp.lt.s32.totalorder %v630, 2
        %vm651 = vcmp.lt.s32.totalorder %v630, 3
        %vm652 = vcmp.lt.s32.totalorder %v630, 4
        %v653 = vsel %vm649, %v633, %v636
        %v654 = vsel %vm652, %v642, 2102212464
        %v655 = vsel %vm651, %v639, %v654
        %v656 = vsel %vm650, %v653, %v655
        %v657 = vsel %vm649, %v636, %v639
        %v658 = vsel %vm652, %v645, 920167782
        %v659 = vsel %vm651, %v642, %v658
        %v660 = vsel %vm650, %v657, %v659
        %v661 = vsel %vm649, %v639, %v642
        %v662 = vsel %vm652, %v648, 1326507024
        %v663 = vsel %vm651, %v645, %v662
        %v664 = vsel %vm650, %v661, %v663
        %v665 = vshll.u32 %v625, 8
        %v666 = vmul.u32.u64.compose %v665, %v664
        %v667 = vextract.low.u32 %v666
        %v668 = vextract.high.u32 %v666
        %v669 = vmul.u32.u64.compose %v665, %v660
        %v670 = vextract.low.u32 %v669
        %v671 = vextract.high.u32 %v669
        %v672 = vmul.u32 %v665, %v656
        %v673 = vadd.s32 %v668, %v670
        %vm674 = vc.u32 %v668, %v670
        %v675 = vadd.s32 %v671, 1
        %v676 = vsel %vm674, %v675, %v671
        %v677 = vadd.s32 %v672, %v676
        %v678 = vadd.s32 %v677, 536870912
        %v679 = vshrl.u32 %v678, 30
        %v680 = vshll.u32 %v679, 30
        %v681 = vsub.s32 %v677, %v680
        %vm682 = vcmp.lt.s32.totalorder %v681, 0
        %v683 = vsub.s32 0, %v681
        %v684 = vsel %vm682, %v683, %v681
        %v685 = vclz %v684
        %v686 = vsub.s32 %v685, 2
        %vm687 = vcmp.gt.s32.totalorder 0, %v686
        %v688 = vsel %vm687, 0, %v686
        %v689 = vsub.s32 32, %v688
        %v690 = vshll.u32 %v681, %v688
        %v691 = vshrl.u32 %v673, %v689
        %v692 = vor.u32 %v690, %v691
        %v693 = vsub.s32 4294967266, %v688
        %v694 = vadd.s32 %v693, 127
        %v695 = vshll.u32 %v694, 23
        %v696 = vor.u32 4788187, %v695
        %v697 = vand.u32 2147483647, %v696
        %v699 = vcvt.s32.f32 %v692
        %v700 = vmul.f32 %v699, %v697
        %v701 = vxor.u32 %v700, 2147483648
        %v702 = vsel %vm619, %v701, %v700
        %v703 = vsub.s32 4, %v679
        %v704 = vsel %vm619, %v703, %v679
        %v705 = vsel %vm618, %v615, %v702
        %v706 = vsel %vm618, 0, %v704
        %v707 = vcosq.f32.pop %v705
        %v708 = vsinq.f32.pop %v705
        %vm709 = vweird.f32 %v615
        %v710 = vadd.s32 %v706, 3
        %v711 = vand.u32 %v710, 3
        %vm712 = vcmp.lt.s32.totalorder %v711, 2
        %vm713 = vcmp.eq.s32.totalorder %v711, 0
        %v714 = vxor.u32 %v708, 2147483648
        %v715 = vsel %vm713, %v707, %v714
        %vm716 = vcmp.eq.s32.totalorder %v711, 2
        %v717 = vxor.u32 %v707, 2147483648
        %v718 = vsel %vm716, %v717, %v708
        %v719 = vsel %vm712, %v715, %v718
        %v720 = vsel %vm709, nan, %v719
        %v721 = vand.u32 2147483647, %v616
        %vm722 = vcmp.le.f32.partialorder %v721, 0.7853982
        %vm723 = vcmp.lt.s32.totalorder %v616, 0
        %v724 = vand.u32 %v616, 2139095040
        %v725 = vshrl.u32 %v724, 23
        %v726 = vsub.s32 %v725, 127
        %v727 = vand.u32 2147483647, %v616
        %v728 = vand.u32 %v727, 8388607
        %v729 = vor.u32 %v728, 8388608
        %v730 = vsub.s32 0, %v729
        %v731 = vadd.s32 %v726, 1
        %vm732 = vcmp.gt.s32.totalorder %v731, 0
        %v733 = vsel %vm732, %v731, 0
        %v734 = vshrl.u32 %v733, 5
        %v735 = vand.u32 %v733, 31
        %v736 = vsub.s32 32, %v735
        %v737 = vshrl.u32 683565275, %v736
        %v738 = vshll.u32 683565275, %v735
        %v739 = vshrl.u32 2475754826, %v736
        %v740 = vor.u32 %v738, %v739
        %v741 = vshll.u32 2475754826, %v735
        %v742 = vshrl.u32 2131351028, %v736
        %v743 = vor.u32 %v741, %v742
        %v744 = vshll.u32 2131351028, %v735
        %v745 = vshrl.u32 2102212464, %v736
        %v746 = vor.u32 %v744, %v745
        %v747 = vshll.u32 2102212464, %v735
        %v748 = vshrl.u32 920167782, %v736
        %v749 = vor.u32 %v747, %v748
        %v750 = vshll.u32 920167782, %v735
        %v751 = vshrl.u32 1326507024, %v736
        %v752 = vor.u32 %v750, %v751
        %vm753 = vcmp.lt.s32.totalorder %v734, 1
        %vm754 = vcmp.lt.s32.totalorder %v734, 2
        %vm755 = vcmp.lt.s32.totalorder %v734, 3
        %vm756 = vcmp.lt.s32.totalorder %v734, 4
        %v757 = vsel %vm753, %v737, %v740
        %v758 = vsel %vm756, %v746, 2102212464
        %v759 = vsel %vm755, %v743, %v758
        %v760 = vsel %vm754, %v757, %v759
        %v761 = vsel %vm753, %v740, %v743
        %v762 = vsel %vm756, %v749, 920167782
        %v763 = vsel %vm755, %v746, %v762
        %v764 = vsel %vm754, %v761, %v763
        %v765 = vsel %vm753, %v743, %v746
        %v766 = vsel %vm756, %v752, 1326507024
        %v767 = vsel %vm755, %v749, %v766
        %v768 = vsel %vm754, %v765, %v767
        %v769 = vshll.u32 %v729, 8
        %v770 = vmul.u32.u64.compose %v769, %v768
        %v771 = vextract.low.u32 %v770
        %v772 = vextract.high.u32 %v770
        %v773 = vmul.u32.u64.compose %v769, %v764
        %v774 = vextract.low.u32 %v773
        %v775 = vextract.high.u32 %v773
        %v776 = vmul.u32 %v769, %v760
        %v777 = vadd.s32 %v772, %v774
        %vm778 = vc.u32 %v772, %v774
        %v779 = vadd.s32 %v775, 1
        %v780 = vsel %vm778, %v779, %v775
        %v781 = vadd.s32 %v776, %v780
        %v782 = vadd.s32 %v781, 536870912
        %v783 = vshrl.u32 %v782, 30
        %v784 = vshll.u32 %v783, 30
        %v785 = vsub.s32 %v781, %v784
        %vm786 = vcmp.lt.s32.totalorder %v785, 0
        %v787 = vsub.s32 0, %v785
        %v788 = vsel %vm786, %v787, %v785
        %v789 = vclz %v788
        %v790 = vsub.s32 %v789, 2
        %vm791 = vcmp.gt.s32.totalorder 0, %v790
        %v792 = vsel %vm791, 0, %v790
        %v793 = vsub.s32 32, %v792
        %v794 = vshll.u32 %v785, %v792
        %v795 = vshrl.u32 %v777, %v793
        %v796 = vor.u32 %v794, %v795
        %v797 = vsub.s32 4294967266, %v792
        %v798 = vadd.s32 %v797, 127
        %v799 = vshll.u32 %v798, 23
        %v800 = vor.u32 4788187, %v799
        %v801 = vand.u32 2147483647, %v800
        %v803 = vcvt.s32.f32 %v796
        %v804 = vmul.f32 %v803, %v801
        %v805 = vxor.u32 %v804, 2147483648
        %v806 = vsel %vm723, %v805, %v804
        %v807 = vsub.s32 4, %v783
        %v808 = vsel %vm723, %v807, %v783
        %v809 = vsel %vm722, %v616, %v806
        %v810 = vsel %vm722, 0, %v808
        %v811 = vcosq.f32.pop %v809
        %v812 = vsinq.f32.pop %v809
        %vm813 = vweird.f32 %v616
        %v814 = vadd.s32 %v810, 3
        %v815 = vand.u32 %v814, 3
        %vm816 = vcmp.lt.s32.totalorder %v815, 2
        %vm817 = vcmp.eq.s32.totalorder %v815, 0
        %v818 = vxor.u32 %v812, 2147483648
        %v819 = vsel %vm817, %v811, %v818
        %vm820 = vcmp.eq.s32.totalorder %v815, 2
        %v821 = vxor.u32 %v811, 2147483648
        %v822 = vsel %vm820, %v821, %v812
        %v823 = vsel %vm816, %v819, %v822
        %v824 = vsel %vm813, nan, %v823
        %v825 = vand.u32 2147483647, %v615
        %vm826 = vcmp.le.f32.partialorder %v825, 0.7853982
        %vm827 = vcmp.lt.s32.totalorder %v615, 0
        %v828 = vand.u32 %v615, 2139095040
        %v829 = vshrl.u32 %v828, 23
        %v830 = vsub.s32 %v829, 127
        %v831 = vand.u32 2147483647, %v615
        %v832 = vand.u32 %v831, 8388607
        %v833 = vor.u32 %v832, 8388608
        %v834 = vsub.s32 0, %v833
        %v835 = vadd.s32 %v830, 1
        %vm836 = vcmp.gt.s32.totalorder %v835, 0
        %v837 = vsel %vm836, %v835, 0
        %v838 = vshrl.u32 %v837, 5
        %v839 = vand.u32 %v837, 31
        %v840 = vsub.s32 32, %v839
        %v841 = vshrl.u32 683565275, %v840
        %v842 = vshll.u32 683565275, %v839
        %v843 = vshrl.u32 2475754826, %v840
        %v844 = vor.u32 %v842, %v843
        %v845 = vshll.u32 2475754826, %v839
        %v846 = vshrl.u32 2131351028, %v840
        %v847 = vor.u32 %v845, %v846
        %v848 = vshll.u32 2131351028, %v839
        %v849 = vshrl.u32 2102212464, %v840
        %v850 = vor.u32 %v848, %v849
        %v851 = vshll.u32 2102212464, %v839
        %v852 = vshrl.u32 920167782, %v840
        %v853 = vor.u32 %v851, %v852
        %v854 = vshll.u32 920167782, %v839
        %v855 = vshrl.u32 1326507024, %v840
        %v856 = vor.u32 %v854, %v855
        %vm857 = vcmp.lt.s32.totalorder %v838, 1
        %vm858 = vcmp.lt.s32.totalorder %v838, 2
        %vm859 = vcmp.lt.s32.totalorder %v838, 3
        %vm860 = vcmp.lt.s32.totalorder %v838, 4
        %v861 = vsel %vm857, %v841, %v844
        %v862 = vsel %vm860, %v850, 2102212464
        %v863 = vsel %vm859, %v847, %v862
        %v864 = vsel %vm858, %v861, %v863
        %v865 = vsel %vm857, %v844, %v847
        %v866 = vsel %vm860, %v853, 920167782
        %v867 = vsel %vm859, %v850, %v866
        %v868 = vsel %vm858, %v865, %v867
        %v869 = vsel %vm857, %v847, %v850
        %v870 = vsel %vm860, %v856, 1326507024
        %v871 = vsel %vm859, %v853, %v870
        %v872 = vsel %vm858, %v869, %v871
        %v873 = vshll.u32 %v833, 8
        %v874 = vmul.u32.u64.compose %v873, %v872
        %v875 = vextract.low.u32 %v874
        %v876 = vextract.high.u32 %v874
        %v877 = vmul.u32.u64.compose %v873, %v868
        %v878 = vextract.low.u32 %v877
        %v879 = vextract.high.u32 %v877
        %v880 = vmul.u32 %v873, %v864
        %v881 = vadd.s32 %v876, %v878
        %vm882 = vc.u32 %v876, %v878
        %v883 = vadd.s32 %v879, 1
        %v884 = vsel %vm882, %v883, %v879
        %v885 = vadd.s32 %v880, %v884
        %v886 = vadd.s32 %v885, 536870912
        %v887 = vshrl.u32 %v886, 30
        %v888 = vshll.u32 %v887, 30
        %v889 = vsub.s32 %v885, %v888
        %vm890 = vcmp.lt.s32.totalorder %v889, 0
        %v891 = vsub.s32 0, %v889
        %v892 = vsel %vm890, %v891, %v889
        %v893 = vclz %v892
        %v894 = vsub.s32 %v893, 2
        %vm895 = vcmp.gt.s32.totalorder 0, %v894
        %v896 = vsel %vm895, 0, %v894
        %v897 = vsub.s32 32, %v896
        %v898 = vshll.u32 %v889, %v896
        %v899 = vshrl.u32 %v881, %v897
        %v900 = vor.u32 %v898, %v899
        %v901 = vsub.s32 4294967266, %v896
        %v902 = vadd.s32 %v901, 127
        %v903 = vshll.u32 %v902, 23
        %v904 = vor.u32 4788187, %v903
        %v905 = vand.u32 2147483647, %v904
        %v907 = vcvt.s32.f32 %v900
        %v908 = vmul.f32 %v907, %v905
        %v909 = vxor.u32 %v908, 2147483648
        %v910 = vsel %vm827, %v909, %v908
        %v911 = vsub.s32 4, %v887
        %v912 = vsel %vm827, %v911, %v887
        %v913 = vsel %vm826, %v615, %v910
        %v914 = vsel %vm826, 0, %v912
        %v915 = vcosq.f32.pop %v913
        %v916 = vsinq.f32.pop %v913
        %vm917 = vweird.f32 %v615
        %v918 = vand.u32 %v914, 3
        %vm919 = vcmp.lt.s32.totalorder %v918, 2
        %vm920 = vcmp.eq.s32.totalorder %v918, 0
        %v921 = vxor.u32 %v916, 2147483648
        %v922 = vsel %vm920, %v915, %v921
        %vm923 = vcmp.eq.s32.totalorder %v918, 2
        %v924 = vxor.u32 %v915, 2147483648
        %v925 = vsel %vm923, %v924, %v916
        %v926 = vsel %vm919, %v922, %v925
        %v927 = vsel %vm917, nan, %v926
        %v928 = vand.u32 2147483647, %v616
        %vm929 = vcmp.le.f32.partialorder %v928, 0.7853982
        %vm930 = vcmp.lt.s32.totalorder %v616, 0
        %v931 = vand.u32 %v616, 2139095040
        %v932 = vshrl.u32 %v931, 23
        %v933 = vsub.s32 %v932, 127
        %v934 = vand.u32 2147483647, %v616
        %v935 = vand.u32 %v934, 8388607
        %v936 = vor.u32 %v935, 8388608
        %v937 = vsub.s32 0, %v936
        %v938 = vadd.s32 %v933, 1
        %vm939 = vcmp.gt.s32.totalorder %v938, 0
        %v940 = vsel %vm939, %v938, 0
        %v941 = vshrl.u32 %v940, 5
        %v942 = vand.u32 %v940, 31
        %v943 = vsub.s32 32, %v942
        %v944 = vshrl.u32 683565275, %v943
        %v945 = vshll.u32 683565275, %v942
        %v946 = vshrl.u32 2475754826, %v943
        %v947 = vor.u32 %v945, %v946
        %v948 = vshll.u32 2475754826, %v942
        %v949 = vshrl.u32 2131351028, %v943
        %v950 = vor.u32 %v948, %v949
        %v951 = vshll.u32 2131351028, %v942
        %v952 = vshrl.u32 2102212464, %v943
        %v953 = vor.u32 %v951, %v952
        %v954 = vshll.u32 2102212464, %v942
        %v955 = vshrl.u32 920167782, %v943
        %v956 = vor.u32 %v954, %v955
        %v957 = vshll.u32 920167782, %v942
        %v958 = vshrl.u32 1326507024, %v943
        %v959 = vor.u32 %v957, %v958
        %vm960 = vcmp.lt.s32.totalorder %v941, 1
        %vm961 = vcmp.lt.s32.totalorder %v941, 2
        %vm962 = vcmp.lt.s32.totalorder %v941, 3
        %vm963 = vcmp.lt.s32.totalorder %v941, 4
        %v964 = vsel %vm960, %v944, %v947
        %v965 = vsel %vm963, %v953, 2102212464
        %v966 = vsel %vm962, %v950, %v965
        %v967 = vsel %vm961, %v964, %v966
        %v968 = vsel %vm960, %v947, %v950
        %v969 = vsel %vm963, %v956, 920167782
        %v970 = vsel %vm962, %v953, %v969
        %v971 = vsel %vm961, %v968, %v970
        %v972 = vsel %vm960, %v950, %v953
        %v973 = vsel %vm963, %v959, 1326507024
        %v974 = vsel %vm962, %v956, %v973
        %v975 = vsel %vm961, %v972, %v974
        %v976 = vshll.u32 %v936, 8
        %v977 = vmul.u32.u64.compose %v976, %v975
        %v978 = vextract.low.u32 %v977
        %v979 = vextract.high.u32 %v977
        %v980 = vmul.u32.u64.compose %v976, %v971
        %v981 = vextract.low.u32 %v980
        %v982 = vextract.high.u32 %v980
        %v983 = vmul.u32 %v976, %v967
        %v984 = vadd.s32 %v979, %v981
        %vm985 = vc.u32 %v979, %v981
        %v986 = vadd.s32 %v982, 1
        %v987 = vsel %vm985, %v986, %v982
        %v988 = vadd.s32 %v983, %v987
        %v989 = vadd.s32 %v988, 536870912
        %v990 = vshrl.u32 %v989, 30
        %v991 = vshll.u32 %v990, 30
        %v992 = vsub.s32 %v988, %v991
        %vm993 = vcmp.lt.s32.totalorder %v992, 0
        %v994 = vsub.s32 0, %v992
        %v995 = vsel %vm993, %v994, %v992
        %v996 = vclz %v995
        %v997 = vsub.s32 %v996, 2
        %vm998 = vcmp.gt.s32.totalorder 0, %v997
        %v999 = vsel %vm998, 0, %v997
        %v1000 = vsub.s32 32, %v999
        %v1001 = vshll.u32 %v992, %v999
        %v1002 = vshrl.u32 %v984, %v1000
        %v1003 = vor.u32 %v1001, %v1002
        %v1004 = vsub.s32 4294967266, %v999
        %v1005 = vadd.s32 %v1004, 127
        %v1006 = vshll.u32 %v1005, 23
        %v1007 = vor.u32 4788187, %v1006
        %v1008 = vand.u32 2147483647, %v1007
        %v1010 = vcvt.s32.f32 %v1003
        %v1011 = vmul.f32 %v1010, %v1008
        %v1012 = vxor.u32 %v1011, 2147483648
        %v1013 = vsel %vm930, %v1012, %v1011
        %v1014 = vsub.s32 4, %v990
        %v1015 = vsel %vm930, %v1014, %v990
        %v1016 = vsel %vm929, %v616, %v1013
        %v1017 = vsel %vm929, 0, %v1015
        %v1018 = vcosq.f32.pop %v1016
        %v1019 = vsinq.f32.pop %v1016
        %vm1020 = vweird.f32 %v616
        %v1021 = vand.u32 %v1017, 3
        %vm1022 = vcmp.lt.s32.totalorder %v1021, 2
        %vm1023 = vcmp.eq.s32.totalorder %v1021, 0
        %v1024 = vxor.u32 %v1019, 2147483648
        %v1025 = vsel %vm1023, %v1018, %v1024
        %vm1026 = vcmp.eq.s32.totalorder %v1021, 2
        %v1027 = vxor.u32 %v1018, 2147483648
        %v1028 = vsel %vm1026, %v1027, %v1019
        %v1029 = vsel %vm1022, %v1025, %v1028
        %v1030 = vsel %vm1020, nan, %v1029
        %v1033 = vcombine.high %v199, %v199
        %v1034 = vcombine.high %v200, %v200
        %v1039 = vcombine.high %v304, %v304
        %v1040 = vcombine.high %v408, %v408
        %v1041 = vrot.slane %v304, 5
        %v1042 = vrot.slane %v1039, 5
        %v1043 = vrot.slane %v408, 5
        %v1044 = vrot.slane %v1040, 5
        %v1051 = vcombine.high %v511, %v511
        %v1052 = vcombine.high %v614, %v614
        %v1053 = vrot.slane %v511, 2
        %v1054 = vrot.slane %v1051, 2
        %v1055 = vrot.slane %v614, 2
        %v1056 = vrot.slane %v1052, 2
        %v1063 = vcombine.high %v720, %v720
        %v1064 = vcombine.high %v824, %v824
        %v1065 = vrot.slane %v720, 7
        %v1066 = vrot.slane %v1063, 7
        %v1067 = vrot.slane %v824, 7
        %v1068 = vrot.slane %v1064, 7
        %v1075 = vcombine.low %v927, %v927
        %v1076 = vcombine.low %v1030, %v1030
        %vm1079 = vcmask 1042432
        %v1080 = vsel %vm1079, %v199, %v1041
        %v1081 = vsel %vm1079, %v1033, %v1042
        %v1082 = vsel %vm1079, %v200, %v1043
        %v1083 = vsel %vm1079, %v1034, %v1044
        %vm1084 = vcmask 1045504
        %v1085 = vsel %vm1084, %v1080, %v1053
        %v1086 = vsel %vm1084, %v1081, %v1054
        %v1087 = vsel %vm1084, %v1082, %v1055
        %v1088 = vsel %vm1084, %v1083, %v1056
        %vm1089 = vcmask 1040384
        %v1090 = vsel %vm1089, %v1053, %v1065
        %v1091 = vsel %vm1089, %v1054, %v1066
        %v1092 = vsel %vm1089, %v1055, %v1067
        %v1093 = vsel %vm1089, %v1056, %v1068
        %vm1094 = vcmask 1043456
        %v1095 = vsel %vm1094, %v1090, %v1075
        %v1096 = vsel %vm1094, %v1091, %v927
        %v1097 = vsel %vm1094, %v1092, %v1076
        %v1098 = vsel %vm1094, %v1093, %v1030
        %v1099 = vld [vmem:[%s1] sm:$0xff]
        %v1100 = vld [vmem:[%s1 + $0x8] sm:$0xff]
        %v1101 = vld [vmem:[%s1 + $0x10] sm:$0xff]
        %v1102 = vld [vmem:[%s1 + $0x18] sm:$0xff]
        %v1103 = vld [vmem:[%s1 + $0x20] sm:$0xff]
        %v1104 = vld [vmem:[%s1 + $0x28] sm:$0xff]
        %v1105 = vld [vmem:[%s1 + $0x30] sm:$0xff]
        %v1106 = vld [vmem:[%s1 + $0x38] sm:$0xff]
        %v1107 = vld [vmem:[%s1 + $0x40] sm:$0xff]
        %v1108 = vld [vmem:[%s1 + $0x48] sm:$0xff]
        %v1109 = vld [vmem:[%s1 + $0x50] sm:$0xff]
        %v1110 = vld [vmem:[%s1 + $0x58] sm:$0xff]
        %v1111 = vld [vmem:[%s1 + $0x60] sm:$0xff]
        %v1112 = vld [vmem:[%s1 + $0x68] sm:$0xff]
        %v1113 = vld [vmem:[%s1 + $0x70] sm:$0xff]
        %v1114 = vld [vmem:[%s1 + $0x78] sm:$0xff]
        %v1115 = vld [vmem:[%s1 + $0x80] sm:$0xf]
        %v1116 = vld [vmem:[%s3] sm:$0xff]
        %v1117 = vld [vmem:[%s3 + $0x8] sm:$0xff]
        %v1118 = vld [vmem:[%s3 + $0x10] sm:$0xff]
        %v1119 = vld [vmem:[%s3 + $0x18] sm:$0xff]
        %v1120 = vld [vmem:[%s3 + $0x20] sm:$0xff]
        %v1121 = vld [vmem:[%s3 + $0x28] sm:$0xff]
        %v1122 = vld [vmem:[%s3 + $0x30] sm:$0xff]
        %v1123 = vld [vmem:[%s3 + $0x38] sm:$0xff]
        %v1124 = vld [vmem:[%s3] sm:$0xf]
        %v1125 = vld [vmem:[%s2] sm:$0xff]
        %v1126 = vld [vmem:[%s2 + $0x8] sm:$0xff]
        %v1127 = vld [vmem:[%s2 + $0x10] sm:$0xff]
        %v1128 = vld [vmem:[%s2 + $0x18] sm:$0xff]
        %v1129 = vld [vmem:[%s2 + $0x20] sm:$0xff]
        %v1130 = vld [vmem:[%s2 + $0x28] sm:$0xff]
        %v1131 = vld [vmem:[%s2 + $0x30] sm:$0xff]
        %v1132 = vld [vmem:[%s2 + $0x38] sm:$0xff]
        %v1133 = vld [vmem:[%s2 + $0x40] sm:$0xff]
        %v1134 = vld [vmem:[%s2 + $0x48] sm:$0xff]
        %v1135 = vld [vmem:[%s2 + $0x50] sm:$0xff]
        %v1136 = vld [vmem:[%s2 + $0x58] sm:$0xff]
        %v1137 = vld [vmem:[%s2 + $0x60] sm:$0xff]
        %v1138 = vld [vmem:[%s2 + $0x68] sm:$0xff]
        %v1139 = vld [vmem:[%s2 + $0x70] sm:$0xff]
        %v1140 = vld [vmem:[%s2 + $0x78] sm:$0xff]
        %vm1141 = vcmask 121856
        %v1143 = vsel %vm1141, %v1125, 0
        %v1146 = vsel %vm1141, %v1126, 0
        %v1149 = vsel %vm1141, %v1127, 0
        %v1152 = vsel %vm1141, %v1128, 0
        %v1155 = vsel %vm1141, %v1129, 0
        %v1158 = vsel %vm1141, %v1130, 0
        %v1161 = vsel %vm1141, %v1131, 0
        %v1164 = vsel %vm1141, %v1132, 0
        %v1167 = vsel %vm1141, %v1133, 0
        %v1170 = vsel %vm1141, %v1134, 0
        %v1173 = vsel %vm1141, %v1135, 0
        %v1176 = vsel %vm1141, %v1136, 0
        %v1179 = vsel %vm1141, %v1137, 0
        %v1182 = vsel %vm1141, %v1138, 0
        %v1185 = vsel %vm1141, %v1139, 0
        %v1188 = vsel %vm1141, %v1140, 0
        %vm1190 = vcmask 1046528
        %v1192 = vsel %vm1190, %v1095, 0
        %v1195 = vsel %vm1190, %v1096, 0
        %v1198 = vsel %vm1190, %v1097, 0
        %v1201 = vsel %vm1190, %v1098, 0
        %1203 = vmatprep.subr.mxu0 %v1086
        %1204 = vmatpush1.msra.mxu0 %v1085
        %1205 = vmatprep.subr.mxu0 %v1195
        %1206 = vmatpush1.msra.mxu0 %v1192
        %1207 = vmatprep.subr.mxu0 0.0
        %1208 = vmatpush1.msra.mxu0 0.0
        %1209 = vmatprep.subr.mxu0 0.0
        %1210 = vmatpush1.msra.mxu0 0.0
        %1211 = vmatprep.subr.mxu0 0.0
        %1212 = vmatpush1.msra.mxu0 0.0
        %1213 = vmatprep.subr.mxu0 0.0
        %1214 = vmatpush1.msra.mxu0 0.0
        %1215 = vmatprep.subr.mxu0 0.0
        %1216 = vmatpush1.msra.mxu0 0.0
        %1217 = vmatprep.subr.mxu0 0.0
        %1218 = vmatpush1.msra.mxu0 0.0
        %1219 = vmatprep.subr.mxu0 0.0
        %1220 = vmatpush1.msra.mxu0 0.0
        %1221 = vmatprep.subr.mxu0 0.0
        %1222 = vmatpush1.msra.mxu0 0.0
        %1223 = vmatprep.subr.mxu0 0.0
        %1224 = vmatpush1.msra.mxu0 0.0
        %1225 = vmatprep.subr.mxu0 0.0
        %1226 = vmatpush1.msra.mxu0 0.0
        %1227 = vmatprep.subr.mxu0 0.0
        %1228 = vmatpush1.msra.mxu0 0.0
        %1229 = vmatprep.subr.mxu0 0.0
        %1230 = vmatpush1.msra.mxu0 0.0
        %1231 = vmatprep.subr.mxu0 0.0
        %1232 = vmatpush1.msra.mxu0 0.0
        %1233 = vmatprep.subr.mxu0 0.0
        %1234 = vmatpush1.msra.mxu0 0.0
        %1235 = vmatprep.subr.mxu0 0.0
        %1236 = vmatpush1.msra.mxu0 0.0
        %1237 = vmatprep.subr.mxu0 0.0
        %1238 = vmatpush1.msra.mxu0 0.0
        %1239 = vmatprep.subr.mxu0 0.0
        %1240 = vmatpush1.msra.mxu0 0.0
        %1241 = vmatprep.subr.mxu0 0.0
        %1242 = vmatpush1.msra.mxu0 0.0
        %1243 = vmatprep.subr.mxu0 0.0
        %1244 = vmatpush1.msra.mxu0 0.0
        %1245 = vmatprep.subr.mxu0 0.0
        %1246 = vmatpush1.msra.mxu0 0.0
        %1247 = vmatprep.subr.mxu0 0.0
        %1248 = vmatpush1.msra.mxu0 0.0
        %1249 = vmatprep.subr.mxu0 0.0
        %1250 = vmatpush1.msra.mxu0 0.0
        %1251 = vmatprep.subr.mxu0 0.0
        %1252 = vmatpush1.msra.mxu0 0.0
        %1253 = vmatprep.subr.mxu0 0.0
        %1254 = vmatpush1.msra.mxu0 0.0
        %1255 = vmatprep.subr.mxu0 0.0
        %1256 = vmatpush1.msra.mxu0 0.0
        %1257 = vmatprep.subr.mxu0 0.0
        %1258 = vmatpush1.msra.mxu0 0.0
        %1259 = vmatprep.subr.mxu0 0.0
        %1260 = vmatpush1.msra.mxu0 0.0
        %1261 = vmatprep.subr.mxu0 0.0
        %1262 = vmatpush1.msra.mxu0 0.0
        %1263 = vmatprep.subr.mxu0 0.0
        %1264 = vmatpush1.msra.mxu0 0.0
        %1265 = vmatprep.subr.mxu0 0.0
        %1266 = vmatpush1.msra.mxu0 0.0
        %1267 = vmatprep.mubr.f32.mxu0 0.0
        %1268 = vmatmul.mubr.f32.gmra.mrb[0].mxu0 %v1143
        %v1269 = vpop.f32.mrb[0].mxu0
        %v1270 = vadd.f32 0.0, %v1269
        %v1271 = vpop.f32.mrb[0].mxu0
        %v1272 = vadd.f32 0.0, %v1271
        %1273 = vmatprep.mubr.f32.mxu0 0.0
        %1274 = vmatmul.mubr.f32.gmra.mrb[0].mxu0 %v1146
        %v1275 = vpop.f32.mrb[0].mxu0
        %v1276 = vadd.f32 0.0, %v1275
        %v1277 = vpop.f32.mrb[0].mxu0
        %v1278 = vadd.f32 0.0, %v1277
        %1279 = vmatprep.mubr.f32.mxu0 0.0
        %1280 = vmatmul.mubr.f32.gmra.mrb[0].mxu0 %v1149
        %v1281 = vpop.f32.mrb[0].mxu0
        %v1282 = vadd.f32 0.0, %v1281
        %v1283 = vpop.f32.mrb[0].mxu0
        %v1284 = vadd.f32 0.0, %v1283
        %1285 = vmatprep.mubr.f32.mxu0 0.0
        %1286 = vmatmul.mubr.f32.gmra.mrb[0].mxu0 %v1152
        %v1287 = vpop.f32.mrb[0].mxu0
        %v1288 = vadd.f32 0.0, %v1287
        %v1289 = vpop.f32.mrb[0].mxu0
        %v1290 = vadd.f32 0.0, %v1289
        %1291 = vmatprep.mubr.f32.mxu0 0.0
        %1292 = vmatmul.mubr.f32.gmra.mrb[0].mxu0 %v1155
        %v1293 = vpop.f32.mrb[0].mxu0
        %v1294 = vadd.f32 0.0, %v1293
        %v1295 = vpop.f32.mrb[0].mxu0
        %v1296 = vadd.f32 0.0, %v1295
        %1297 = vmatprep.mubr.f32.mxu0 0.0
        %1298 = vmatmul.mubr.f32.gmra.mrb[0].mxu0 %v1158
        %v1299 = vpop.f32.mrb[0].mxu0
        %v1300 = vadd.f32 0.0, %v1299
        %v1301 = vpop.f32.mrb[0].mxu0
        %v1302 = vadd.f32 0.0, %v1301
        %1303 = vmatprep.mubr.f32.mxu0 0.0
        %1304 = vmatmul.mubr.f32.gmra.mrb[0].mxu0 %v1161
        %v1305 = vpop.f32.mrb[0].mxu0
        %v1306 = vadd.f32 0.0, %v1305
        %v1307 = vpop.f32.mrb[0].mxu0
        %v1308 = vadd.f32 0.0, %v1307
        %1309 = vmatprep.mubr.f32.mxu0 0.0
        %1310 = vmatmul.mubr.f32.gmra.mrb[0].mxu0 %v1164
        %v1311 = vpop.f32.mrb[0].mxu0
        %v1312 = vadd.f32 0.0, %v1311
        %v1313 = vpop.f32.mrb[0].mxu0
        %v1314 = vadd.f32 0.0, %v1313
        %1315 = vmatprep.mubr.f32.mxu0 0.0
        %1316 = vmatmul.mubr.f32.gmra.mrb[0].mxu0 %v1167
        %v1317 = vpop.f32.mrb[0].mxu0
        %v1318 = vadd.f32 0.0, %v1317
        %v1319 = vpop.f32.mrb[0].mxu0
        %v1320 = vadd.f32 0.0, %v1319
        %1321 = vmatprep.mubr.f32.mxu0 0.0
        %1322 = vmatmul.mubr.f32.gmra.mrb[0].mxu0 %v1170
        %v1323 = vpop.f32.mrb[0].mxu0
        %v1324 = vadd.f32 0.0, %v1323
        %v1325 = vpop.f32.mrb[0].mxu0
        %v1326 = vadd.f32 0.0, %v1325
        %1327 = vmatprep.mubr.f32.mxu0 0.0
        %1328 = vmatmul.mubr.f32.gmra.mrb[0].mxu0 %v1173
        %v1329 = vpop.f32.mrb[0].mxu0
        %v1330 = vadd.f32 0.0, %v1329
        %v1331 = vpop.f32.mrb[0].mxu0
        %v1332 = vadd.f32 0.0, %v1331
        %1333 = vmatprep.mubr.f32.mxu0 0.0
        %1334 = vmatmul.mubr.f32.gmra.mrb[0].mxu0 %v1176
        %v1335 = vpop.f32.mrb[0].mxu0
        %v1336 = vadd.f32 0.0, %v1335
        %v1337 = vpop.f32.mrb[0].mxu0
        %v1338 = vadd.f32 0.0, %v1337
        %1339 = vmatprep.mubr.f32.mxu0 0.0
        %1340 = vmatmul.mubr.f32.gmra.mrb[0].mxu0 %v1179
        %v1341 = vpop.f32.mrb[0].mxu0
        %v1342 = vadd.f32 0.0, %v1341
        %v1343 = vpop.f32.mrb[0].mxu0
        %v1344 = vadd.f32 0.0, %v1343
        %1345 = vmatprep.mubr.f32.mxu0 0.0
        %1346 = vmatmul.mubr.f32.gmra.mrb[0].mxu0 %v1182
        %v1347 = vpop.f32.mrb[0].mxu0
        %v1348 = vadd.f32 0.0, %v1347
        %v1349 = vpop.f32.mrb[0].mxu0
        %v1350 = vadd.f32 0.0, %v1349
        %1351 = vmatprep.mubr.f32.mxu0 0.0
        %1352 = vmatmul.mubr.f32.gmra.mrb[0].mxu0 %v1185
        %v1353 = vpop.f32.mrb[0].mxu0
        %v1354 = vadd.f32 0.0, %v1353
        %v1355 = vpop.f32.mrb[0].mxu0
        %v1356 = vadd.f32 0.0, %v1355
        %1357 = vmatprep.mubr.f32.mxu0 0.0
        %1358 = vmatmul.mubr.f32.gmra.mrb[0].mxu0 %v1188
        %v1359 = vpop.f32.mrb[0].mxu0
        %v1360 = vadd.f32 0.0, %v1359
        %v1361 = vpop.f32.mrb[0].mxu0
        %v1362 = vadd.f32 0.0, %v1361
        %1363 = vdwg.mxu0
        %1364 = vmatprep.subr.mxu0 %v1088
        %1365 = vmatpush1.msra.mxu0 %v1087
        %1366 = vmatprep.subr.mxu0 %v1201
        %1367 = vmatpush1.msra.mxu0 %v1198
        %1368 = vmatprep.subr.mxu0 0.0
        %1369 = vmatpush1.msra.mxu0 0.0
        %1370 = vmatprep.subr.mxu0 0.0
        %1371 = vmatpush1.msra.mxu0 0.0
        %1372 = vmatprep.subr.mxu0 0.0
        %1373 = vmatpush1.msra.mxu0 0.0
        %1374 = vmatprep.subr.mxu0 0.0
        %1375 = vmatpush1.msra.mxu0 0.0
        %1376 = vmatprep.subr.mxu0 0.0
        %1377 = vmatpush1.msra.mxu0 0.0
        %1378 = vmatprep.subr.mxu0 0.0
        %1379 = vmatpush1.msra.mxu0 0.0
        %1380 = vmatprep.subr.mxu0 0.0
        %1381 = vmatpush1.msra.mxu0 0.0
        %1382 = vmatprep.subr.mxu0 0.0
        %1383 = vmatpush1.msra.mxu0 0.0
        %1384 = vmatprep.subr.mxu0 0.0
        %1385 = vmatpush1.msra.mxu0 0.0
        %1386 = vmatprep.subr.mxu0 0.0
        %1387 = vmatpush1.msra.mxu0 0.0
        %1388 = vmatprep.subr.mxu0 0.0
        %1389 = vmatpush1.msra.mxu0 0.0
        %1390 = vmatprep.subr.mxu0 0.0
        %1391 = vmatpush1.msra.mxu0 0.0
        %1392 = vmatprep.subr.mxu0 0.0
        %1393 = vmatpush1.msra.mxu0 0.0
        %1394 = vmatprep.subr.mxu0 0.0
        %1395 = vmatpush1.msra.mxu0 0.0
        %1396 = vmatprep.subr.mxu0 0.0
        %1397 = vmatpush1.msra.mxu0 0.0
        %1398 = vmatprep.subr.mxu0 0.0
        %1399 = vmatpush1.msra.mxu0 0.0
        %1400 = vmatprep.subr.mxu0 0.0
        %1401 = vmatpush1.msra.mxu0 0.0
        %1402 = vmatprep.subr.mxu0 0.0
        %1403 = vmatpush1.msra.mxu0 0.0
        %1404 = vmatprep.subr.mxu0 0.0
        %1405 = vmatpush1.msra.mxu0 0.0
        %1406 = vmatprep.subr.mxu0 0.0
        %1407 = vmatpush1.msra.mxu0 0.0
        %1408 = vmatprep.subr.mxu0 0.0
        %1409 = vmatpush1.msra.mxu0 0.0
        %1410 = vmatprep.subr.mxu0 0.0
        %1411 = vmatpush1.msra.mxu0 0.0
        %1412 = vmatprep.subr.mxu0 0.0
        %1413 = vmatpush1.msra.mxu0 0.0
        %1414 = vmatprep.subr.mxu0 0.0
        %1415 = vmatpush1.msra.mxu0 0.0
        %1416 = vmatprep.subr.mxu0 0.0
        %1417 = vmatpush1.msra.mxu0 0.0
        %1418 = vmatprep.subr.mxu0 0.0
        %1419 = vmatpush1.msra.mxu0 0.0
        %1420 = vmatprep.subr.mxu0 0.0
        %1421 = vmatpush1.msra.mxu0 0.0
        %1422 = vmatprep.subr.mxu0 0.0
        %1423 = vmatpush1.msra.mxu0 0.0
        %1424 = vmatprep.subr.mxu0 0.0
        %1425 = vmatpush1.msra.mxu0 0.0
        %1426 = vmatprep.subr.mxu0 0.0
        %1427 = vmatpush1.msra.mxu0 0.0
        %1428 = vmatprep.mubr.f32.mxu0 0.0
        %1429 = vmatmul.mubr.f32.gmra.mrb[0].mxu0 %v1143
        %v1430 = vpop.f32.mrb[0].mxu0
        %v1431 = vadd.f32 0.0, %v1430
        %v1432 = vpop.f32.mrb[0].mxu0
        %v1433 = vadd.f32 0.0, %v1432
        %1434 = vmatprep.mubr.f32.mxu0 0.0
        %1435 = vmatmul.mubr.f32.gmra.mrb[0].mxu0 %v1146
        %v1436 = vpop.f32.mrb[0].mxu0
        %v1437 = vadd.f32 0.0, %v1436
        %v1438 = vpop.f32.mrb[0].mxu0
        %v1439 = vadd.f32 0.0, %v1438
        %1440 = vmatprep.mubr.f32.mxu0 0.0
        %1441 = vmatmul.mubr.f32.gmra.mrb[0].mxu0 %v1149
        %v1442 = vpop.f32.mrb[0].mxu0
        %v1443 = vadd.f32 0.0, %v1442
        %v1444 = vpop.f32.mrb[0].mxu0
        %v1445 = vadd.f32 0.0, %v1444
        %1446 = vmatprep.mubr.f32.mxu0 0.0
        %1447 = vmatmul.mubr.f32.gmra.mrb[0].mxu0 %v1152
        %v1448 = vpop.f32.mrb[0].mxu0
        %v1449 = vadd.f32 0.0, %v1448
        %v1450 = vpop.f32.mrb[0].mxu0
        %v1451 = vadd.f32 0.0, %v1450
        %1452 = vmatprep.mubr.f32.mxu0 0.0
        %1453 = vmatmul.mubr.f32.gmra.mrb[0].mxu0 %v1155
        %v1454 = vpop.f32.mrb[0].mxu0
        %v1455 = vadd.f32 0.0, %v1454
        %v1456 = vpop.f32.mrb[0].mxu0
        %v1457 = vadd.f32 0.0, %v1456
        %1458 = vmatprep.mubr.f32.mxu0 0.0
        %1459 = vmatmul.mubr.f32.gmra.mrb[0].mxu0 %v1158
        %v1460 = vpop.f32.mrb[0].mxu0
        %v1461 = vadd.f32 0.0, %v1460
        %v1462 = vpop.f32.mrb[0].mxu0
        %v1463 = vadd.f32 0.0, %v1462
        %1464 = vmatprep.mubr.f32.mxu0 0.0
        %1465 = vmatmul.mubr.f32.gmra.mrb[0].mxu0 %v1161
        %v1466 = vpop.f32.mrb[0].mxu0
        %v1467 = vadd.f32 0.0, %v1466
        %v1468 = vpop.f32.mrb[0].mxu0
        %v1469 = vadd.f32 0.0, %v1468
        %1470 = vmatprep.mubr.f32.mxu0 0.0
        %1471 = vmatmul.mubr.f32.gmra.mrb[0].mxu0 %v1164
        %v1472 = vpop.f32.mrb[0].mxu0
        %v1473 = vadd.f32 0.0, %v1472
        %v1474 = vpop.f32.mrb[0].mxu0
        %v1475 = vadd.f32 0.0, %v1474
        %1476 = vmatprep.mubr.f32.mxu0 0.0
        %1477 = vmatmul.mubr.f32.gmra.mrb[0].mxu0 %v1167
        %v1478 = vpop.f32.mrb[0].mxu0
        %v1479 = vadd.f32 0.0, %v1478
        %v1480 = vpop.f32.mrb[0].mxu0
        %v1481 = vadd.f32 0.0, %v1480
        %1482 = vmatprep.mubr.f32.mxu0 0.0
        %1483 = vmatmul.mubr.f32.gmra.mrb[0].mxu0 %v1170
        %v1484 = vpop.f32.mrb[0].mxu0
        %v1485 = vadd.f32 0.0, %v1484
        %v1486 = vpop.f32.mrb[0].mxu0
        %v1487 = vadd.f32 0.0, %v1486
        %1488 = vmatprep.mubr.f32.mxu0 0.0
        %1489 = vmatmul.mubr.f32.gmra.mrb[0].mxu0 %v1173
        %v1490 = vpop.f32.mrb[0].mxu0
        %v1491 = vadd.f32 0.0, %v1490
        %v1492 = vpop.f32.mrb[0].mxu0
        %v1493 = vadd.f32 0.0, %v1492
        %1494 = vmatprep.mubr.f32.mxu0 0.0
        %1495 = vmatmul.mubr.f32.gmra.mrb[0].mxu0 %v1176
        %v1496 = vpop.f32.mrb[0].mxu0
        %v1497 = vadd.f32 0.0, %v1496
        %v1498 = vpop.f32.mrb[0].mxu0
        %v1499 = vadd.f32 0.0, %v1498
        %1500 = vmatprep.mubr.f32.mxu0 0.0
        %1501 = vmatmul.mubr.f32.gmra.mrb[0].mxu0 %v1179
        %v1502 = vpop.f32.mrb[0].mxu0
        %v1503 = vadd.f32 0.0, %v1502
        %v1504 = vpop.f32.mrb[0].mxu0
        %v1505 = vadd.f32 0.0, %v1504
        %1506 = vmatprep.mubr.f32.mxu0 0.0
        %1507 = vmatmul.mubr.f32.gmra.mrb[0].mxu0 %v1182
        %v1508 = vpop.f32.mrb[0].mxu0
        %v1509 = vadd.f32 0.0, %v1508
        %v1510 = vpop.f32.mrb[0].mxu0
        %v1511 = vadd.f32 0.0, %v1510
        %1512 = vmatprep.mubr.f32.mxu0 0.0
        %1513 = vmatmul.mubr.f32.gmra.mrb[0].mxu0 %v1185
        %v1514 = vpop.f32.mrb[0].mxu0
        %v1515 = vadd.f32 0.0, %v1514
        %v1516 = vpop.f32.mrb[0].mxu0
        %v1517 = vadd.f32 0.0, %v1516
        %1518 = vmatprep.mubr.f32.mxu0 0.0
        %1519 = vmatmul.mubr.f32.gmra.mrb[0].mxu0 %v1188
        %v1520 = vpop.f32.mrb[0].mxu0
        %v1521 = vadd.f32 0.0, %v1520
        %v1522 = vpop.f32.mrb[0].mxu0
        %v1523 = vadd.f32 0.0, %v1522
        %1524 = vdwg.mxu0
        %1526 = vset.pattern.permute.xlu0 0
        %1527 = vperm.xlu0 %1526, %v1116
        %v1528 = vpop.permute.xlu0 %1527
        %1531 = vset.pattern.permute.xlu0 0
        %1532 = vperm.xlu0 %1531, %v1117
        %v1533 = vpop.permute.xlu0 %1532
        %1536 = vset.pattern.permute.xlu0 0
        %1537 = vperm.xlu0 %1536, %v1118
        %v1538 = vpop.permute.xlu0 %1537
        %1541 = vset.pattern.permute.xlu0 0
        %1542 = vperm.xlu0 %1541, %v1119
        %v1543 = vpop.permute.xlu0 %1542
        %1546 = vset.pattern.permute.xlu0 0
        %1547 = vperm.xlu0 %1546, %v1120
        %v1548 = vpop.permute.xlu0 %1547
        %1551 = vset.pattern.permute.xlu0 0
        %1552 = vperm.xlu0 %1551, %v1121
        %v1553 = vpop.permute.xlu0 %1552
        %1556 = vset.pattern.permute.xlu0 0
        %1557 = vperm.xlu0 %1556, %v1122
        %v1558 = vpop.permute.xlu0 %1557
        %1561 = vset.pattern.permute.xlu0 0
        %1562 = vperm.xlu0 %1561, %v1123
        %v1563 = vpop.permute.xlu0 %1562
        %v1565 = vadd.f32 %v1270, %v1528
        %v1566 = vadd.f32 %v1272, %v1528
        %v1567 = vadd.f32 %v1431, %v1528
        %v1568 = vadd.f32 %v1433, %v1528
        %v1569 = vadd.f32 %v1276, %v1533
        %v1570 = vadd.f32 %v1278, %v1533
        %v1571 = vadd.f32 %v1437, %v1533
        %v1572 = vadd.f32 %v1439, %v1533
        %v1573 = vadd.f32 %v1282, %v1538
        %v1574 = vadd.f32 %v1284, %v1538
        %v1575 = vadd.f32 %v1443, %v1538
        %v1576 = vadd.f32 %v1445, %v1538
        %v1577 = vadd.f32 %v1288, %v1543
        %v1578 = vadd.f32 %v1290, %v1543
        %v1579 = vadd.f32 %v1449, %v1543
        %v1580 = vadd.f32 %v1451, %v1543
        %v1581 = vadd.f32 %v1294, %v1548
        %v1582 = vadd.f32 %v1296, %v1548
        %v1583 = vadd.f32 %v1455, %v1548
        %v1584 = vadd.f32 %v1457, %v1548
        %v1585 = vadd.f32 %v1300, %v1553
        %v1586 = vadd.f32 %v1302, %v1553
        %v1587 = vadd.f32 %v1461, %v1553
        %v1588 = vadd.f32 %v1463, %v1553
        %v1589 = vadd.f32 %v1306, %v1558
        %v1590 = vadd.f32 %v1308, %v1558
        %v1591 = vadd.f32 %v1467, %v1558
        %v1592 = vadd.f32 %v1469, %v1558
        %v1593 = vadd.f32 %v1312, %v1563
        %v1594 = vadd.f32 %v1314, %v1563
        %v1595 = vadd.f32 %v1473, %v1563
        %v1596 = vadd.f32 %v1475, %v1563
        %vm1597 = vcmp.gt.f32.partialorder %v1565, 0.0
        %vm1598 = vcmp.gt.f32.partialorder %v1566, 0.0
        %vm1599 = vcmp.gt.f32.partialorder %v1567, 0.0
        %vm1600 = vcmp.gt.f32.partialorder %v1568, 0.0
        %vm1601 = vcmp.gt.f32.partialorder %v1569, 0.0
        %vm1602 = vcmp.gt.f32.partialorder %v1570, 0.0
        %vm1603 = vcmp.gt.f32.partialorder %v1571, 0.0
        %vm1604 = vcmp.gt.f32.partialorder %v1572, 0.0
        %vm1605 = vcmp.gt.f32.partialorder %v1573, 0.0
        %vm1606 = vcmp.gt.f32.partialorder %v1574, 0.0
        %vm1607 = vcmp.gt.f32.partialorder %v1575, 0.0
        %vm1608 = vcmp.gt.f32.partialorder %v1576, 0.0
        %vm1609 = vcmp.gt.f32.partialorder %v1577, 0.0
        %vm1610 = vcmp.gt.f32.partialorder %v1578, 0.0
        %vm1611 = vcmp.gt.f32.partialorder %v1579, 0.0
        %vm1612 = vcmp.gt.f32.partialorder %v1580, 0.0
        %vm1613 = vcmp.gt.f32.partialorder %v1581, 0.0
        %vm1614 = vcmp.gt.f32.partialorder %v1582, 0.0
        %vm1615 = vcmp.gt.f32.partialorder %v1583, 0.0
        %vm1616 = vcmp.gt.f32.partialorder %v1584, 0.0
        %vm1617 = vcmp.gt.f32.partialorder %v1585, 0.0
        %vm1618 = vcmp.gt.f32.partialorder %v1586, 0.0
        %vm1619 = vcmp.gt.f32.partialorder %v1587, 0.0
        %vm1620 = vcmp.gt.f32.partialorder %v1588, 0.0
        %vm1621 = vcmp.gt.f32.partialorder %v1589, 0.0
        %vm1622 = vcmp.gt.f32.partialorder %v1590, 0.0
        %vm1623 = vcmp.gt.f32.partialorder %v1591, 0.0
        %vm1624 = vcmp.gt.f32.partialorder %v1592, 0.0
        %vm1625 = vcmp.gt.f32.partialorder %v1593, 0.0
        %vm1626 = vcmp.gt.f32.partialorder %v1594, 0.0
        %vm1627 = vcmp.gt.f32.partialorder %v1595, 0.0
        %vm1628 = vcmp.gt.f32.partialorder %v1596, 0.0
        %v1629 = vmul.f32 %v1565, 0.01
        %v1630 = vmul.f32 %v1566, 0.01
        %v1631 = vmul.f32 %v1567, 0.01
        %v1632 = vmul.f32 %v1568, 0.01
        %v1633 = vmul.f32 %v1569, 0.01
        %v1634 = vmul.f32 %v1570, 0.01
        %v1635 = vmul.f32 %v1571, 0.01
        %v1636 = vmul.f32 %v1572, 0.01
        %v1637 = vmul.f32 %v1573, 0.01
        %v1638 = vmul.f32 %v1574, 0.01
        %v1639 = vmul.f32 %v1575, 0.01
        %v1640 = vmul.f32 %v1576, 0.01
        %v1641 = vmul.f32 %v1577, 0.01
        %v1642 = vmul.f32 %v1578, 0.01
        %v1643 = vmul.f32 %v1579, 0.01
        %v1644 = vmul.f32 %v1580, 0.01
        %v1645 = vmul.f32 %v1581, 0.01
        %v1646 = vmul.f32 %v1582, 0.01
        %v1647 = vmul.f32 %v1583, 0.01
        %v1648 = vmul.f32 %v1584, 0.01
        %v1649 = vmul.f32 %v1585, 0.01
        %v1650 = vmul.f32 %v1586, 0.01
        %v1651 = vmul.f32 %v1587, 0.01
        %v1652 = vmul.f32 %v1588, 0.01
        %v1653 = vmul.f32 %v1589, 0.01
        %v1654 = vmul.f32 %v1590, 0.01
        %v1655 = vmul.f32 %v1591, 0.01
        %v1656 = vmul.f32 %v1592, 0.01
        %v1657 = vmul.f32 %v1593, 0.01
        %v1658 = vmul.f32 %v1594, 0.01
        %v1659 = vmul.f32 %v1595, 0.01
        %v1660 = vmul.f32 %v1596, 0.01
        %v1661 = vsel %vm1597, %v1565, %v1629
        %v1662 = vsel %vm1598, %v1566, %v1630
        %v1663 = vsel %vm1599, %v1567, %v1631
        %v1664 = vsel %vm1600, %v1568, %v1632
        %v1665 = vsel %vm1601, %v1569, %v1633
        %v1666 = vsel %vm1602, %v1570, %v1634
        %v1667 = vsel %vm1603, %v1571, %v1635
        %v1668 = vsel %vm1604, %v1572, %v1636
        %v1669 = vsel %vm1605, %v1573, %v1637
        %v1670 = vsel %vm1606, %v1574, %v1638
        %v1671 = vsel %vm1607, %v1575, %v1639
        %v1672 = vsel %vm1608, %v1576, %v1640
        %v1673 = vsel %vm1609, %v1577, %v1641
        %v1674 = vsel %vm1610, %v1578, %v1642
        %v1675 = vsel %vm1611, %v1579, %v1643
        %v1676 = vsel %vm1612, %v1580, %v1644
        %v1677 = vsel %vm1613, %v1581, %v1645
        %v1678 = vsel %vm1614, %v1582, %v1646
        %v1679 = vsel %vm1615, %v1583, %v1647
        %v1680 = vsel %vm1616, %v1584, %v1648
        %v1681 = vsel %vm1617, %v1585, %v1649
        %v1682 = vsel %vm1618, %v1586, %v1650
        %v1683 = vsel %vm1619, %v1587, %v1651
        %v1684 = vsel %vm1620, %v1588, %v1652
        %v1685 = vsel %vm1621, %v1589, %v1653
        %v1686 = vsel %vm1622, %v1590, %v1654
        %v1687 = vsel %vm1623, %v1591, %v1655
        %v1688 = vsel %vm1624, %v1592, %v1656
        %v1689 = vsel %vm1625, %v1593, %v1657
        %v1690 = vsel %vm1626, %v1594, %v1658
        %v1691 = vsel %vm1627, %v1595, %v1659
        %v1692 = vsel %vm1628, %v1596, %v1660
        %1693 = vset.pattern.permute.xlu0 1
        %1694 = vperm.xlu0 %1693, %v1116
        %v1695 = vpop.permute.xlu0 %1694
        %1697 = vset.pattern.permute.xlu0 1
        %1698 = vperm.xlu0 %1697, %v1117
        %v1699 = vpop.permute.xlu0 %1698
        %1701 = vset.pattern.permute.xlu0 1
        %1702 = vperm.xlu0 %1701, %v1118
        %v1703 = vpop.permute.xlu0 %1702
        %1705 = vset.pattern.permute.xlu0 1
        %1706 = vperm.xlu0 %1705, %v1119
        %v1707 = vpop.permute.xlu0 %1706
        %1709 = vset.pattern.permute.xlu0 1
        %1710 = vperm.xlu0 %1709, %v1120
        %v1711 = vpop.permute.xlu0 %1710
        %1713 = vset.pattern.permute.xlu0 1
        %1714 = vperm.xlu0 %1713, %v1121
        %v1715 = vpop.permute.xlu0 %1714
        %1717 = vset.pattern.permute.xlu0 1
        %1718 = vperm.xlu0 %1717, %v1122
        %v1719 = vpop.permute.xlu0 %1718
        %1721 = vset.pattern.permute.xlu0 1
        %1722 = vperm.xlu0 %1721, %v1123
        %v1723 = vpop.permute.xlu0 %1722
        %vm1725 = vcmask 523264
        %v1727 = vsel %vm1725, %v1099, 0
        %v1730 = vsel %vm1725, %v1100, 0
        %v1733 = vsel %vm1725, %v1101, 0
        %v1736 = vsel %vm1725, %v1102, 0
        %v1739 = vsel %vm1725, %v1103, 0
        %v1742 = vsel %vm1725, %v1104, 0
        %v1745 = vsel %vm1725, %v1105, 0
        %v1748 = vsel %vm1725, %v1106, 0
        %1750 = vmatprep.subr.mxu0 %v1662
        %1751 = vmatpush1.msra.mxu0 %v1661
        %1752 = vmatprep.subr.mxu0 %v1666
        %1753 = vmatpush1.msra.mxu0 %v1665
        %1754 = vmatprep.subr.mxu0 %v1670
        %1755 = vmatpush1.msra.mxu0 %v1669
        %1756 = vmatprep.subr.mxu0 %v1674
        %1757 = vmatpush1.msra.mxu0 %v1673
        %1758 = vmatprep.subr.mxu0 %v1678
        %1759 = vmatpush1.msra.mxu0 %v1677
        %1760 = vmatprep.subr.mxu0 %v1682
        %1761 = vmatpush1.msra.mxu0 %v1681
        %1762 = vmatprep.subr.mxu0 %v1686
        %1763 = vmatpush1.msra.mxu0 %v1685
        %1764 = vmatprep.subr.mxu0 %v1690
        %1765 = vmatpush1.msra.mxu0 %v1689
        %1766 = vmatprep.subr.mxu0 0.0
        %1767 = vmatpush1.msra.mxu0 0.0
        %1768 = vmatprep.subr.mxu0 0.0
        %1769 = vmatpush1.msra.mxu0 0.0
        %1770 = vmatprep.subr.mxu0 0.0
        %1771 = vmatpush1.msra.mxu0 0.0
        %1772 = vmatprep.subr.mxu0 0.0
        %1773 = vmatpush1.msra.mxu0 0.0
        %1774 = vmatprep.subr.mxu0 0.0
        %1775 = vmatpush1.msra.mxu0 0.0
        %1776 = vmatprep.subr.mxu0 0.0
        %1777 = vmatpush1.msra.mxu0 0.0
        %1778 = vmatprep.subr.mxu0 0.0
        %1779 = vmatpush1.msra.mxu0 0.0
        %1780 = vmatprep.subr.mxu0 0.0
        %1781 = vmatpush1.msra.mxu0 0.0
        %1782 = vmatprep.subr.mxu0 0.0
        %1783 = vmatpush1.msra.mxu0 0.0
        %1784 = vmatprep.subr.mxu0 0.0
        %1785 = vmatpush1.msra.mxu0 0.0
        %1786 = vmatprep.subr.mxu0 0.0
        %1787 = vmatpush1.msra.mxu0 0.0
        %1788 = vmatprep.subr.mxu0 0.0
        %1789 = vmatpush1.msra.mxu0 0.0
        %1790 = vmatprep.subr.mxu0 0.0
        %1791 = vmatpush1.msra.mxu0 0.0
        %1792 = vmatprep.subr.mxu0 0.0
        %1793 = vmatpush1.msra.mxu0 0.0
        %1794 = vmatprep.subr.mxu0 0.0
        %1795 = vmatpush1.msra.mxu0 0.0
        %1796 = vmatprep.subr.mxu0 0.0
        %1797 = vmatpush1.msra.mxu0 0.0
        %1798 = vmatprep.subr.mxu0 0.0
        %1799 = vmatpush1.msra.mxu0 0.0
        %1800 = vmatprep.subr.mxu0 0.0
        %1801 = vmatpush1.msra.mxu0 0.0
        %1802 = vmatprep.subr.mxu0 0.0
        %1803 = vmatpush1.msra.mxu0 0.0
        %1804 = vmatprep.subr.mxu0 0.0
        %1805 = vmatpush1.msra.mxu0 0.0
        %1806 = vmatprep.subr.mxu0 0.0
        %1807 = vmatpush1.msra.mxu0 0.0
        %1808 = vmatprep.subr.mxu0 0.0
        %1809 = vmatpush1.msra.mxu0 0.0
        %1810 = vmatprep.subr.mxu0 0.0
        %1811 = vmatpush1.msra.mxu0 0.0
        %1812 = vmatprep.subr.mxu0 0.0
        %1813 = vmatpush1.msra.mxu0 0.0
        %1814 = vmatprep.mubr.f32.mxu0 0.0
        %1815 = vmatmul.mubr.f32.gmra.mrb[0].mxu0 %v1727
        %v1816 = vpop.f32.mrb[0].mxu0
        %v1817 = vadd.f32 %v1695, %v1816
        %v1818 = vpop.f32.mrb[0].mxu0
        %v1819 = vadd.f32 %v1695, %v1818
        %1820 = vmatprep.mubr.f32.mxu0 0.0
        %1821 = vmatmul.mubr.f32.gmra.mrb[0].mxu0 %v1730
        %v1822 = vpop.f32.mrb[0].mxu0
        %v1823 = vadd.f32 %v1699, %v1822
        %v1824 = vpop.f32.mrb[0].mxu0
        %v1825 = vadd.f32 %v1699, %v1824
        %1826 = vmatprep.mubr.f32.mxu0 0.0
        %1827 = vmatmul.mubr.f32.gmra.mrb[0].mxu0 %v1733
        %v1828 = vpop.f32.mrb[0].mxu0
        %v1829 = vadd.f32 %v1703, %v1828
        %v1830 = vpop.f32.mrb[0].mxu0
        %v1831 = vadd.f32 %v1703, %v1830
        %1832 = vmatprep.mubr.f32.mxu0 0.0
        %1833 = vmatmul.mubr.f32.gmra.mrb[0].mxu0 %v1736
        %v1834 = vpop.f32.mrb[0].mxu0
        %v1835 = vadd.f32 %v1707, %v1834
        %v1836 = vpop.f32.mrb[0].mxu0
        %v1837 = vadd.f32 %v1707, %v1836
        %1838 = vmatprep.mubr.f32.mxu0 0.0
        %1839 = vmatmul.mubr.f32.gmra.mrb[0].mxu0 %v1739
        %v1840 = vpop.f32.mrb[0].mxu0
        %v1841 = vadd.f32 %v1711, %v1840
        %v1842 = vpop.f32.mrb[0].mxu0
        %v1843 = vadd.f32 %v1711, %v1842
        %1844 = vmatprep.mubr.f32.mxu0 0.0
        %1845 = vmatmul.mubr.f32.gmra.mrb[0].mxu0 %v1742
        %v1846 = vpop.f32.mrb[0].mxu0
        %v1847 = vadd.f32 %v1715, %v1846
        %v1848 = vpop.f32.mrb[0].mxu0
        %v1849 = vadd.f32 %v1715, %v1848
        %1850 = vmatprep.mubr.f32.mxu0 0.0
        %1851 = vmatmul.mubr.f32.gmra.mrb[0].mxu0 %v1745
        %v1852 = vpop.f32.mrb[0].mxu0
        %v1853 = vadd.f32 %v1719, %v1852
        %v1854 = vpop.f32.mrb[0].mxu0
        %v1855 = vadd.f32 %v1719, %v1854
        %1856 = vmatprep.mubr.f32.mxu0 0.0
        %1857 = vmatmul.mubr.f32.gmra.mrb[0].mxu0 %v1748
        %v1858 = vpop.f32.mrb[0].mxu0
        %v1859 = vadd.f32 %v1723, %v1858
        %v1860 = vpop.f32.mrb[0].mxu0
        %v1861 = vadd.f32 %v1723, %v1860
        %1862 = vdwg.mxu0
        %1863 = vmatprep.subr.mxu0 %v1664
        %1864 = vmatpush1.msra.mxu0 %v1663
        %1865 = vmatprep.subr.mxu0 %v1668
        %1866 = vmatpush1.msra.mxu0 %v1667
        %1867 = vmatprep.subr.mxu0 %v1672
        %1868 = vmatpush1.msra.mxu0 %v1671
        %1869 = vmatprep.subr.mxu0 %v1676
        %1870 = vmatpush1.msra.mxu0 %v1675
        %1871 = vmatprep.subr.mxu0 %v1680
        %1872 = vmatpush1.msra.mxu0 %v1679
        %1873 = vmatprep.subr.mxu0 %v1684
        %1874 = vmatpush1.msra.mxu0 %v1683
        %1875 = vmatprep.subr.mxu0 %v1688
        %1876 = vmatpush1.msra.mxu0 %v1687
        %1877 = vmatprep.subr.mxu0 %v1692
        %1878 = vmatpush1.msra.mxu0 %v1691
        %1879 = vmatprep.subr.mxu0 0.0
        %1880 = vmatpush1.msra.mxu0 0.0
        %1881 = vmatprep.subr.mxu0 0.0
        %1882 = vmatpush1.msra.mxu0 0.0
        %1883 = vmatprep.subr.mxu0 0.0
        %1884 = vmatpush1.msra.mxu0 0.0
        %1885 = vmatprep.subr.mxu0 0.0
        %1886 = vmatpush1.msra.mxu0 0.0
        %1887 = vmatprep.subr.mxu0 0.0
        %1888 = vmatpush1.msra.mxu0 0.0
        %1889 = vmatprep.subr.mxu0 0.0
        %1890 = vmatpush1.msra.mxu0 0.0
        %1891 = vmatprep.subr.mxu0 0.0
        %1892 = vmatpush1.msra.mxu0 0.0
        %1893 = vmatprep.subr.mxu0 0.0
        %1894 = vmatpush1.msra.mxu0 0.0
        %1895 = vmatprep.subr.mxu0 0.0
        %1896 = vmatpush1.msra.mxu0 0.0
        %1897 = vmatprep.subr.mxu0 0.0
        %1898 = vmatpush1.msra.mxu0 0.0
        %1899 = vmatprep.subr.mxu0 0.0
        %1900 = vmatpush1.msra.mxu0 0.0
        %1901 = vmatprep.subr.mxu0 0.0
        %1902 = vmatpush1.msra.mxu0 0.0
        %1903 = vmatprep.subr.mxu0 0.0
        %1904 = vmatpush1.msra.mxu0 0.0
        %1905 = vmatprep.subr.mxu0 0.0
        %1906 = vmatpush1.msra.mxu0 0.0
        %1907 = vmatprep.subr.mxu0 0.0
        %1908 = vmatpush1.msra.mxu0 0.0
        %1909 = vmatprep.subr.mxu0 0.0
        %1910 = vmatpush1.msra.mxu0 0.0
        %1911 = vmatprep.subr.mxu0 0.0
        %1912 = vmatpush1.msra.mxu0 0.0
        %1913 = vmatprep.subr.mxu0 0.0
        %1914 = vmatpush1.msra.mxu0 0.0
        %1915 = vmatprep.subr.mxu0 0.0
        %1916 = vmatpush1.msra.mxu0 0.0
        %1917 = vmatprep.subr.mxu0 0.0
        %1918 = vmatpush1.msra.mxu0 0.0
        %1919 = vmatprep.subr.mxu0 0.0
        %1920 = vmatpush1.msra.mxu0 0.0
        %1921 = vmatprep.subr.mxu0 0.0
        %1922 = vmatpush1.msra.mxu0 0.0
        %1923 = vmatprep.subr.mxu0 0.0
        %1924 = vmatpush1.msra.mxu0 0.0
        %1925 = vmatprep.subr.mxu0 0.0
        %1926 = vmatpush1.msra.mxu0 0.0
        %1927 = vmatprep.mubr.f32.mxu0 0.0
        %1928 = vmatmul.mubr.f32.gmra.mrb[0].mxu0 %v1727
        %v1929 = vpop.f32.mrb[0].mxu0
        %v1930 = vadd.f32 %v1695, %v1929
        %v1931 = vpop.f32.mrb[0].mxu0
        %v1932 = vadd.f32 %v1695, %v1931
        %1933 = vmatprep.mubr.f32.mxu0 0.0
        %1934 = vmatmul.mubr.f32.gmra.mrb[0].mxu0 %v1730
        %v1935 = vpop.f32.mrb[0].mxu0
        %v1936 = vadd.f32 %v1699, %v1935
        %v1937 = vpop.f32.mrb[0].mxu0
        %v1938 = vadd.f32 %v1699, %v1937
        %1939 = vmatprep.mubr.f32.mxu0 0.0
        %1940 = vmatmul.mubr.f32.gmra.mrb[0].mxu0 %v1733
        %v1941 = vpop.f32.mrb[0].mxu0
        %v1942 = vadd.f32 %v1703, %v1941
        %v1943 = vpop.f32.mrb[0].mxu0
        %v1944 = vadd.f32 %v1703, %v1943
        %1945 = vmatprep.mubr.f32.mxu0 0.0
        %1946 = vmatmul.mubr.f32.gmra.mrb[0].mxu0 %v1736
        %v1947 = vpop.f32.mrb[0].mxu0
        %v1948 = vadd.f32 %v1707, %v1947
        %v1949 = vpop.f32.mrb[0].mxu0
        %v1950 = vadd.f32 %v1707, %v1949
        %1951 = vmatprep.mubr.f32.mxu0 0.0
        %1952 = vmatmul.mubr.f32.gmra.mrb[0].mxu0 %v1739
        %v1953 = vpop.f32.mrb[0].mxu0
        %v1954 = vadd.f32 %v1711, %v1953
        %v1955 = vpop.f32.mrb[0].mxu0
        %v1956 = vadd.f32 %v1711, %v1955
        %1957 = vmatprep.mubr.f32.mxu0 0.0
        %1958 = vmatmul.mubr.f32.gmra.mrb[0].mxu0 %v1742
        %v1959 = vpop.f32.mrb[0].mxu0
        %v1960 = vadd.f32 %v1715, %v1959
        %v1961 = vpop.f32.mrb[0].mxu0
        %v1962 = vadd.f32 %v1715, %v1961
        %1963 = vmatprep.mubr.f32.mxu0 0.0
        %1964 = vmatmul.mubr.f32.gmra.mrb[0].mxu0 %v1745
        %v1965 = vpop.f32.mrb[0].mxu0
        %v1966 = vadd.f32 %v1719, %v1965
        %v1967 = vpop.f32.mrb[0].mxu0
        %v1968 = vadd.f32 %v1719, %v1967
        %1969 = vmatprep.mubr.f32.mxu0 0.0
        %1970 = vmatmul.mubr.f32.gmra.mrb[0].mxu0 %v1748
        %v1971 = vpop.f32.mrb[0].mxu0
        %v1972 = vadd.f32 %v1723, %v1971
        %v1973 = vpop.f32.mrb[0].mxu0
        %v1974 = vadd.f32 %v1723, %v1973
        %1975 = vdwg.mxu0
        %vm1976 = vcmp.gt.f32.partialorder %v1817, 0.0
        %vm1977 = vcmp.gt.f32.partialorder %v1819, 0.0
        %vm1978 = vcmp.gt.f32.partialorder %v1930, 0.0
        %vm1979 = vcmp.gt.f32.partialorder %v1932, 0.0
        %vm1980 = vcmp.gt.f32.partialorder %v1823, 0.0
        %vm1981 = vcmp.gt.f32.partialorder %v1825, 0.0
        %vm1982 = vcmp.gt.f32.partialorder %v1936, 0.0
        %vm1983 = vcmp.gt.f32.partialorder %v1938, 0.0
        %vm1984 = vcmp.gt.f32.partialorder %v1829, 0.0
        %vm1985 = vcmp.gt.f32.partialorder %v1831, 0.0
        %vm1986 = vcmp.gt.f32.partialorder %v1942, 0.0
        %vm1987 = vcmp.gt.f32.partialorder %v1944, 0.0
        %vm1988 = vcmp.gt.f32.partialorder %v1835, 0.0
        %vm1989 = vcmp.gt.f32.partialorder %v1837, 0.0
        %vm1990 = vcmp.gt.f32.partialorder %v1948, 0.0
        %vm1991 = vcmp.gt.f32.partialorder %v1950, 0.0
        %vm1992 = vcmp.gt.f32.partialorder %v1841, 0.0
        %vm1993 = vcmp.gt.f32.partialorder %v1843, 0.0
        %vm1994 = vcmp.gt.f32.partialorder %v1954, 0.0
        %vm1995 = vcmp.gt.f32.partialorder %v1956, 0.0
        %vm1996 = vcmp.gt.f32.partialorder %v1847, 0.0
        %vm1997 = vcmp.gt.f32.partialorder %v1849, 0.0
        %vm1998 = vcmp.gt.f32.partialorder %v1960, 0.0
        %vm1999 = vcmp.gt.f32.partialorder %v1962, 0.0
        %vm2000 = vcmp.gt.f32.partialorder %v1853, 0.0
        %vm2001 = vcmp.gt.f32.partialorder %v1855, 0.0
        %vm2002 = vcmp.gt.f32.partialorder %v1966, 0.0
        %vm2003 = vcmp.gt.f32.partialorder %v1968, 0.0
        %vm2004 = vcmp.gt.f32.partialorder %v1859, 0.0
        %vm2005 = vcmp.gt.f32.partialorder %v1861, 0.0
        %vm2006 = vcmp.gt.f32.partialorder %v1972, 0.0
        %vm2007 = vcmp.gt.f32.partialorder %v1974, 0.0
        %v2008 = vmul.f32 %v1817, 0.01
        %v2009 = vmul.f32 %v1819, 0.01
        %v2010 = vmul.f32 %v1930, 0.01
        %v2011 = vmul.f32 %v1932, 0.01
        %v2012 = vmul.f32 %v1823, 0.01
        %v2013 = vmul.f32 %v1825, 0.01
        %v2014 = vmul.f32 %v1936, 0.01
        %v2015 = vmul.f32 %v1938, 0.01
        %v2016 = vmul.f32 %v1829, 0.01
        %v2017 = vmul.f32 %v1831, 0.01
        %v2018 = vmul.f32 %v1942, 0.01
        %v2019 = vmul.f32 %v1944, 0.01
        %v2020 = vmul.f32 %v1835, 0.01
        %v2021 = vmul.f32 %v1837, 0.01
        %v2022 = vmul.f32 %v1948, 0.01
        %v2023 = vmul.f32 %v1950, 0.01
        %v2024 = vmul.f32 %v1841, 0.01
        %v2025 = vmul.f32 %v1843, 0.01
        %v2026 = vmul.f32 %v1954, 0.01
        %v2027 = vmul.f32 %v1956, 0.01
        %v2028 = vmul.f32 %v1847, 0.01
        %v2029 = vmul.f32 %v1849, 0.01
        %v2030 = vmul.f32 %v1960, 0.01
        %v2031 = vmul.f32 %v1962, 0.01
        %v2032 = vmul.f32 %v1853, 0.01
        %v2033 = vmul.f32 %v1855, 0.01
        %v2034 = vmul.f32 %v1966, 0.01
        %v2035 = vmul.f32 %v1968, 0.01
        %v2036 = vmul.f32 %v1859, 0.01
        %v2037 = vmul.f32 %v1861, 0.01
        %v2038 = vmul.f32 %v1972, 0.01
        %v2039 = vmul.f32 %v1974, 0.01
        %v2040 = vsel %vm1976, %v1817, %v2008
        %v2041 = vsel %vm1977, %v1819, %v2009
        %v2042 = vsel %vm1978, %v1930, %v2010
        %v2043 = vsel %vm1979, %v1932, %v2011
        %v2044 = vsel %vm1980, %v1823, %v2012
        %v2045 = vsel %vm1981, %v1825, %v2013
        %v2046 = vsel %vm1982, %v1936, %v2014
        %v2047 = vsel %vm1983, %v1938, %v2015
        %v2048 = vsel %vm1984, %v1829, %v2016
        %v2049 = vsel %vm1985, %v1831, %v2017
        %v2050 = vsel %vm1986, %v1942, %v2018
        %v2051 = vsel %vm1987, %v1944, %v2019
        %v2052 = vsel %vm1988, %v1835, %v2020
        %v2053 = vsel %vm1989, %v1837, %v2021
        %v2054 = vsel %vm1990, %v1948, %v2022
        %v2055 = vsel %vm1991, %v1950, %v2023
        %v2056 = vsel %vm1992, %v1841, %v2024
        %v2057 = vsel %vm1993, %v1843, %v2025
        %v2058 = vsel %vm1994, %v1954, %v2026
        %v2059 = vsel %vm1995, %v1956, %v2027
        %v2060 = vsel %vm1996, %v1847, %v2028
        %v2061 = vsel %vm1997, %v1849, %v2029
        %v2062 = vsel %vm1998, %v1960, %v2030
        %v2063 = vsel %vm1999, %v1962, %v2031
        %v2064 = vsel %vm2000, %v1853, %v2032
        %v2065 = vsel %vm2001, %v1855, %v2033
        %v2066 = vsel %vm2002, %v1966, %v2034
        %v2067 = vsel %vm2003, %v1968, %v2035
        %v2068 = vsel %vm2004, %v1859, %v2036
        %v2069 = vsel %vm2005, %v1861, %v2037
        %v2070 = vsel %vm2006, %v1972, %v2038
        %v2071 = vsel %vm2007, %v1974, %v2039
        %v2073 = vsel %vm1725, %v1107, 0
        %v2076 = vsel %vm1725, %v1108, 0
        %v2079 = vsel %vm1725, %v1109, 0
        %v2082 = vsel %vm1725, %v1110, 0
        %v2085 = vsel %vm1725, %v1111, 0
        %v2088 = vsel %vm1725, %v1112, 0
        %v2091 = vsel %vm1725, %v1113, 0
        %v2094 = vsel %vm1725, %v1114, 0
        %2096 = vmatprep.subr.mxu0 %v2041
        %2097 = vmatpush1.msra.mxu0 %v2040
        %2098 = vmatprep.subr.mxu0 %v2045
        %2099 = vmatpush1.msra.mxu0 %v2044
        %2100 = vmatprep.subr.mxu0 %v2049
        %2101 = vmatpush1.msra.mxu0 %v2048
        %2102 = vmatprep.subr.mxu0 %v2053
        %2103 = vmatpush1.msra.mxu0 %v2052
        %2104 = vmatprep.subr.mxu0 %v2057
        %2105 = vmatpush1.msra.mxu0 %v2056
        %2106 = vmatprep.subr.mxu0 %v2061
        %2107 = vmatpush1.msra.mxu0 %v2060
        %2108 = vmatprep.subr.mxu0 %v2065
        %2109 = vmatpush1.msra.mxu0 %v2064
        %2110 = vmatprep.subr.mxu0 %v2069
        %2111 = vmatpush1.msra.mxu0 %v2068
        %2112 = vmatprep.subr.mxu0 0.0
        %2113 = vmatpush1.msra.mxu0 0.0
        %2114 = vmatprep.subr.mxu0 0.0
        %2115 = vmatpush1.msra.mxu0 0.0
        %2116 = vmatprep.subr.mxu0 0.0
        %2117 = vmatpush1.msra.mxu0 0.0
        %2118 = vmatprep.subr.mxu0 0.0
        %2119 = vmatpush1.msra.mxu0 0.0
        %2120 = vmatprep.subr.mxu0 0.0
        %2121 = vmatpush1.msra.mxu0 0.0
        %2122 = vmatprep.subr.mxu0 0.0
        %2123 = vmatpush1.msra.mxu0 0.0
        %2124 = vmatprep.subr.mxu0 0.0
        %2125 = vmatpush1.msra.mxu0 0.0
        %2126 = vmatprep.subr.mxu0 0.0
        %2127 = vmatpush1.msra.mxu0 0.0
        %2128 = vmatprep.subr.mxu0 0.0
        %2129 = vmatpush1.msra.mxu0 0.0
        %2130 = vmatprep.subr.mxu0 0.0
        %2131 = vmatpush1.msra.mxu0 0.0
        %2132 = vmatprep.subr.mxu0 0.0
        %2133 = vmatpush1.msra.mxu0 0.0
        %2134 = vmatprep.subr.mxu0 0.0
        %2135 = vmatpush1.msra.mxu0 0.0
        %2136 = vmatprep.subr.mxu0 0.0
        %2137 = vmatpush1.msra.mxu0 0.0
        %2138 = vmatprep.subr.mxu0 0.0
        %2139 = vmatpush1.msra.mxu0 0.0
        %2140 = vmatprep.subr.mxu0 0.0
        %2141 = vmatpush1.msra.mxu0 0.0
        %2142 = vmatprep.subr.mxu0 0.0
        %2143 = vmatpush1.msra.mxu0 0.0
        %2144 = vmatprep.subr.mxu0 0.0
        %2145 = vmatpush1.msra.mxu0 0.0
        %2146 = vmatprep.subr.mxu0 0.0
        %2147 = vmatpush1.msra.mxu0 0.0
        %2148 = vmatprep.subr.mxu0 0.0
        %2149 = vmatpush1.msra.mxu0 0.0
        %2150 = vmatprep.subr.mxu0 0.0
        %2151 = vmatpush1.msra.mxu0 0.0
        %2152 = vmatprep.subr.mxu0 0.0
        %2153 = vmatpush1.msra.mxu0 0.0
        %2154 = vmatprep.subr.mxu0 0.0
        %2155 = vmatpush1.msra.mxu0 0.0
        %2156 = vmatprep.subr.mxu0 0.0
        %2157 = vmatpush1.msra.mxu0 0.0
        %2158 = vmatprep.subr.mxu0 0.0
        %2159 = vmatpush1.msra.mxu0 0.0
        %2160 = vmatprep.mubr.f32.mxu0 0.0
        %2161 = vmatmul.mubr.f32.gmra.mrb[0].mxu0 %v2073
        %v2162 = vpop.f32.mrb[0].mxu0
        %v2163 = vadd.f32 %v1318, %v2162
        %v2164 = vpop.f32.mrb[0].mxu0
        %v2165 = vadd.f32 %v1320, %v2164
        %2166 = vmatprep.mubr.f32.mxu0 0.0
        %2167 = vmatmul.mubr.f32.gmra.mrb[0].mxu0 %v2076
        %v2168 = vpop.f32.mrb[0].mxu0
        %v2169 = vadd.f32 %v1324, %v2168
        %v2170 = vpop.f32.mrb[0].mxu0
        %v2171 = vadd.f32 %v1326, %v2170
        %2172 = vmatprep.mubr.f32.mxu0 0.0
        %2173 = vmatmul.mubr.f32.gmra.mrb[0].mxu0 %v2079
        %v2174 = vpop.f32.mrb[0].mxu0
        %v2175 = vadd.f32 %v1330, %v2174
        %v2176 = vpop.f32.mrb[0].mxu0
        %v2177 = vadd.f32 %v1332, %v2176
        %2178 = vmatprep.mubr.f32.mxu0 0.0
        %2179 = vmatmul.mubr.f32.gmra.mrb[0].mxu0 %v2082
        %v2180 = vpop.f32.mrb[0].mxu0
        %v2181 = vadd.f32 %v1336, %v2180
        %v2182 = vpop.f32.mrb[0].mxu0
        %v2183 = vadd.f32 %v1338, %v2182
        %2184 = vmatprep.mubr.f32.mxu0 0.0
        %2185 = vmatmul.mubr.f32.gmra.mrb[0].mxu0 %v2085
        %v2186 = vpop.f32.mrb[0].mxu0
        %v2187 = vadd.f32 %v1342, %v2186
        %v2188 = vpop.f32.mrb[0].mxu0
        %v2189 = vadd.f32 %v1344, %v2188
        %2190 = vmatprep.mubr.f32.mxu0 0.0
        %2191 = vmatmul.mubr.f32.gmra.mrb[0].mxu0 %v2088
        %v2192 = vpop.f32.mrb[0].mxu0
        %v2193 = vadd.f32 %v1348, %v2192
        %v2194 = vpop.f32.mrb[0].mxu0
        %v2195 = vadd.f32 %v1350, %v2194
        %2196 = vmatprep.mubr.f32.mxu0 0.0
        %2197 = vmatmul.mubr.f32.gmra.mrb[0].mxu0 %v2091
        %v2198 = vpop.f32.mrb[0].mxu0
        %v2199 = vadd.f32 %v1354, %v2198
        %v2200 = vpop.f32.mrb[0].mxu0
        %v2201 = vadd.f32 %v1356, %v2200
        %2202 = vmatprep.mubr.f32.mxu0 0.0
        %2203 = vmatmul.mubr.f32.gmra.mrb[0].mxu0 %v2094
        %v2204 = vpop.f32.mrb[0].mxu0
        %v2205 = vadd.f32 %v1360, %v2204
        %v2206 = vpop.f32.mrb[0].mxu0
        %v2207 = vadd.f32 %v1362, %v2206
        %2208 = vdwg.mxu0
        %2209 = vmatprep.subr.mxu0 %v2043
        %2210 = vmatpush1.msra.mxu0 %v2042
        %2211 = vmatprep.subr.mxu0 %v2047
        %2212 = vmatpush1.msra.mxu0 %v2046
        %2213 = vmatprep.subr.mxu0 %v2051
        %2214 = vmatpush1.msra.mxu0 %v2050
        %2215 = vmatprep.subr.mxu0 %v2055
        %2216 = vmatpush1.msra.mxu0 %v2054
        %2217 = vmatprep.subr.mxu0 %v2059
        %2218 = vmatpush1.msra.mxu0 %v2058
        %2219 = vmatprep.subr.mxu0 %v2063
        %2220 = vmatpush1.msra.mxu0 %v2062
        %2221 = vmatprep.subr.mxu0 %v2067
        %2222 = vmatpush1.msra.mxu0 %v2066
        %2223 = vmatprep.subr.mxu0 %v2071
        %2224 = vmatpush1.msra.mxu0 %v2070
        %2225 = vmatprep.subr.mxu0 0.0
        %2226 = vmatpush1.msra.mxu0 0.0
        %2227 = vmatprep.subr.mxu0 0.0
        %2228 = vmatpush1.msra.mxu0 0.0
        %2229 = vmatprep.subr.mxu0 0.0
        %2230 = vmatpush1.msra.mxu0 0.0
        %2231 = vmatprep.subr.mxu0 0.0
        %2232 = vmatpush1.msra.mxu0 0.0
        %2233 = vmatprep.subr.mxu0 0.0
        %2234 = vmatpush1.msra.mxu0 0.0
        %2235 = vmatprep.subr.mxu0 0.0
        %2236 = vmatpush1.msra.mxu0 0.0
        %2237 = vmatprep.subr.mxu0 0.0
        %2238 = vmatpush1.msra.mxu0 0.0
        %2239 = vmatprep.subr.mxu0 0.0
        %2240 = vmatpush1.msra.mxu0 0.0
        %2241 = vmatprep.subr.mxu0 0.0
        %2242 = vmatpush1.msra.mxu0 0.0
        %2243 = vmatprep.subr.mxu0 0.0
        %2244 = vmatpush1.msra.mxu0 0.0
        %2245 = vmatprep.subr.mxu0 0.0
        %2246 = vmatpush1.msra.mxu0 0.0
        %2247 = vmatprep.subr.mxu0 0.0
        %2248 = vmatpush1.msra.mxu0 0.0
        %2249 = vmatprep.subr.mxu0 0.0
        %2250 = vmatpush1.msra.mxu0 0.0
        %2251 = vmatprep.subr.mxu0 0.0
        %2252 = vmatpush1.msra.mxu0 0.0
        %2253 = vmatprep.subr.mxu0 0.0
        %2254 = vmatpush1.msra.mxu0 0.0
        %2255 = vmatprep.subr.mxu0 0.0
        %2256 = vmatpush1.msra.mxu0 0.0
        %2257 = vmatprep.subr.mxu0 0.0
        %2258 = vmatpush1.msra.mxu0 0.0
        %2259 = vmatprep.subr.mxu0 0.0
        %2260 = vmatpush1.msra.mxu0 0.0
        %2261 = vmatprep.subr.mxu0 0.0
        %2262 = vmatpush1.msra.mxu0 0.0
        %2263 = vmatprep.subr.mxu0 0.0
        %2264 = vmatpush1.msra.mxu0 0.0
        %2265 = vmatprep.subr.mxu0 0.0
        %2266 = vmatpush1.msra.mxu0 0.0
        %2267 = vmatprep.subr.mxu0 0.0
        %2268 = vmatpush1.msra.mxu0 0.0
        %2269 = vmatprep.subr.mxu0 0.0
        %2270 = vmatpush1.msra.mxu0 0.0
        %2271 = vmatprep.subr.mxu0 0.0
        %2272 = vmatpush1.msra.mxu0 0.0
        %2273 = vmatprep.mubr.f32.mxu0 0.0
        %2274 = vmatmul.mubr.f32.gmra.mrb[0].mxu0 %v2073
        %v2275 = vpop.f32.mrb[0].mxu0
        %v2276 = vadd.f32 %v1479, %v2275
        %v2277 = vpop.f32.mrb[0].mxu0
        %v2278 = vadd.f32 %v1481, %v2277
        %2279 = vmatprep.mubr.f32.mxu0 0.0
        %2280 = vmatmul.mubr.f32.gmra.mrb[0].mxu0 %v2076
        %v2281 = vpop.f32.mrb[0].mxu0
        %v2282 = vadd.f32 %v1485, %v2281
        %v2283 = vpop.f32.mrb[0].mxu0
        %v2284 = vadd.f32 %v1487, %v2283
        %2285 = vmatprep.mubr.f32.mxu0 0.0
        %2286 = vmatmul.mubr.f32.gmra.mrb[0].mxu0 %v2079
        %v2287 = vpop.f32.mrb[0].mxu0
        %v2288 = vadd.f32 %v1491, %v2287
        %v2289 = vpop.f32.mrb[0].mxu0
        %v2290 = vadd.f32 %v1493, %v2289
        %2291 = vmatprep.mubr.f32.mxu0 0.0
        %2292 = vmatmul.mubr.f32.gmra.mrb[0].mxu0 %v2082
        %v2293 = vpop.f32.mrb[0].mxu0
        %v2294 = vadd.f32 %v1497, %v2293
        %v2295 = vpop.f32.mrb[0].mxu0
        %v2296 = vadd.f32 %v1499, %v2295
        %2297 = vmatprep.mubr.f32.mxu0 0.0
        %2298 = vmatmul.mubr.f32.gmra.mrb[0].mxu0 %v2085
        %v2299 = vpop.f32.mrb[0].mxu0
        %v2300 = vadd.f32 %v1503, %v2299
        %v2301 = vpop.f32.mrb[0].mxu0
        %v2302 = vadd.f32 %v1505, %v2301
        %2303 = vmatprep.mubr.f32.mxu0 0.0
        %2304 = vmatmul.mubr.f32.gmra.mrb[0].mxu0 %v2088
        %v2305 = vpop.f32.mrb[0].mxu0
        %v2306 = vadd.f32 %v1509, %v2305
        %v2307 = vpop.f32.mrb[0].mxu0
        %v2308 = vadd.f32 %v1511, %v2307
        %2309 = vmatprep.mubr.f32.mxu0 0.0
        %2310 = vmatmul.mubr.f32.gmra.mrb[0].mxu0 %v2091
        %v2311 = vpop.f32.mrb[0].mxu0
        %v2312 = vadd.f32 %v1515, %v2311
        %v2313 = vpop.f32.mrb[0].mxu0
        %v2314 = vadd.f32 %v1517, %v2313
        %2315 = vmatprep.mubr.f32.mxu0 0.0
        %2316 = vmatmul.mubr.f32.gmra.mrb[0].mxu0 %v2094
        %v2317 = vpop.f32.mrb[0].mxu0
        %v2318 = vadd.f32 %v1521, %v2317
        %v2319 = vpop.f32.mrb[0].mxu0
        %v2320 = vadd.f32 %v1523, %v2319
        %2321 = vdwg.mxu0
        %2322 = vset.pattern.permute.xlu0 2
        %2323 = vperm.xlu0 %2322, %v1116
        %v2324 = vpop.permute.xlu0 %2323
        %2326 = vset.pattern.permute.xlu0 2
        %2327 = vperm.xlu0 %2326, %v1117
        %v2328 = vpop.permute.xlu0 %2327
        %2330 = vset.pattern.permute.xlu0 2
        %2331 = vperm.xlu0 %2330, %v1118
        %v2332 = vpop.permute.xlu0 %2331
        %2334 = vset.pattern.permute.xlu0 2
        %2335 = vperm.xlu0 %2334, %v1119
        %v2336 = vpop.permute.xlu0 %2335
        %2338 = vset.pattern.permute.xlu0 2
        %2339 = vperm.xlu0 %2338, %v1120
        %v2340 = vpop.permute.xlu0 %2339
        %2342 = vset.pattern.permute.xlu0 2
        %2343 = vperm.xlu0 %2342, %v1121
        %v2344 = vpop.permute.xlu0 %2343
        %2346 = vset.pattern.permute.xlu0 2
        %2347 = vperm.xlu0 %2346, %v1122
        %v2348 = vpop.permute.xlu0 %2347
        %2350 = vset.pattern.permute.xlu0 2
        %2351 = vperm.xlu0 %2350, %v1123
        %v2352 = vpop.permute.xlu0 %2351
        %v2354 = vadd.f32 %v2163, %v2324
        %v2355 = vadd.f32 %v2165, %v2324
        %v2356 = vadd.f32 %v2276, %v2324
        %v2357 = vadd.f32 %v2278, %v2324
        %v2358 = vadd.f32 %v2169, %v2328
        %v2359 = vadd.f32 %v2171, %v2328
        %v2360 = vadd.f32 %v2282, %v2328
        %v2361 = vadd.f32 %v2284, %v2328
        %v2362 = vadd.f32 %v2175, %v2332
        %v2363 = vadd.f32 %v2177, %v2332
        %v2364 = vadd.f32 %v2288, %v2332
        %v2365 = vadd.f32 %v2290, %v2332
        %v2366 = vadd.f32 %v2181, %v2336
        %v2367 = vadd.f32 %v2183, %v2336
        %v2368 = vadd.f32 %v2294, %v2336
        %v2369 = vadd.f32 %v2296, %v2336
        %v2370 = vadd.f32 %v2187, %v2340
        %v2371 = vadd.f32 %v2189, %v2340
        %v2372 = vadd.f32 %v2300, %v2340
        %v2373 = vadd.f32 %v2302, %v2340
        %v2374 = vadd.f32 %v2193, %v2344
        %v2375 = vadd.f32 %v2195, %v2344
        %v2376 = vadd.f32 %v2306, %v2344
        %v2377 = vadd.f32 %v2308, %v2344
        %v2378 = vadd.f32 %v2199, %v2348
        %v2379 = vadd.f32 %v2201, %v2348
        %v2380 = vadd.f32 %v2312, %v2348
        %v2381 = vadd.f32 %v2314, %v2348
        %v2382 = vadd.f32 %v2205, %v2352
        %v2383 = vadd.f32 %v2207, %v2352
        %v2384 = vadd.f32 %v2318, %v2352
        %v2385 = vadd.f32 %v2320, %v2352
        %vm2386 = vcmp.gt.f32.partialorder %v2354, 0.0
        %vm2387 = vcmp.gt.f32.partialorder %v2355, 0.0
        %vm2388 = vcmp.gt.f32.partialorder %v2356, 0.0
        %vm2389 = vcmp.gt.f32.partialorder %v2357, 0.0
        %vm2390 = vcmp.gt.f32.partialorder %v2358, 0.0
        %vm2391 = vcmp.gt.f32.partialorder %v2359, 0.0
        %vm2392 = vcmp.gt.f32.partialorder %v2360, 0.0
        %vm2393 = vcmp.gt.f32.partialorder %v2361, 0.0
        %vm2394 = vcmp.gt.f32.partialorder %v2362, 0.0
        %vm2395 = vcmp.gt.f32.partialorder %v2363, 0.0
        %vm2396 = vcmp.gt.f32.partialorder %v2364, 0.0
        %vm2397 = vcmp.gt.f32.partialorder %v2365, 0.0
        %vm2398 = vcmp.gt.f32.partialorder %v2366, 0.0
        %vm2399 = vcmp.gt.f32.partialorder %v2367, 0.0
        %vm2400 = vcmp.gt.f32.partialorder %v2368, 0.0
        %vm2401 = vcmp.gt.f32.partialorder %v2369, 0.0
        %vm2402 = vcmp.gt.f32.partialorder %v2370, 0.0
        %vm2403 = vcmp.gt.f32.partialorder %v2371, 0.0
        %vm2404 = vcmp.gt.f32.partialorder %v2372, 0.0
        %vm2405 = vcmp.gt.f32.partialorder %v2373, 0.0
        %vm2406 = vcmp.gt.f32.partialorder %v2374, 0.0
        %vm2407 = vcmp.gt.f32.partialorder %v2375, 0.0
        %vm2408 = vcmp.gt.f32.partialorder %v2376, 0.0
        %vm2409 = vcmp.gt.f32.partialorder %v2377, 0.0
        %vm2410 = vcmp.gt.f32.partialorder %v2378, 0.0
        %vm2411 = vcmp.gt.f32.partialorder %v2379, 0.0
        %vm2412 = vcmp.gt.f32.partialorder %v2380, 0.0
        %vm2413 = vcmp.gt.f32.partialorder %v2381, 0.0
        %vm2414 = vcmp.gt.f32.partialorder %v2382, 0.0
        %vm2415 = vcmp.gt.f32.partialorder %v2383, 0.0
        %vm2416 = vcmp.gt.f32.partialorder %v2384, 0.0
        %vm2417 = vcmp.gt.f32.partialorder %v2385, 0.0
        %v2418 = vmul.f32 %v2354, 0.01
        %v2419 = vmul.f32 %v2355, 0.01
        %v2420 = vmul.f32 %v2356, 0.01
        %v2421 = vmul.f32 %v2357, 0.01
        %v2422 = vmul.f32 %v2358, 0.01
        %v2423 = vmul.f32 %v2359, 0.01
        %v2424 = vmul.f32 %v2360, 0.01
        %v2425 = vmul.f32 %v2361, 0.01
        %v2426 = vmul.f32 %v2362, 0.01
        %v2427 = vmul.f32 %v2363, 0.01
        %v2428 = vmul.f32 %v2364, 0.01
        %v2429 = vmul.f32 %v2365, 0.01
        %v2430 = vmul.f32 %v2366, 0.01
        %v2431 = vmul.f32 %v2367, 0.01
        %v2432 = vmul.f32 %v2368, 0.01
        %v2433 = vmul.f32 %v2369, 0.01
        %v2434 = vmul.f32 %v2370, 0.01
        %v2435 = vmul.f32 %v2371, 0.01
        %v2436 = vmul.f32 %v2372, 0.01
        %v2437 = vmul.f32 %v2373, 0.01
        %v2438 = vmul.f32 %v2374, 0.01
        %v2439 = vmul.f32 %v2375, 0.01
        %v2440 = vmul.f32 %v2376, 0.01
        %v2441 = vmul.f32 %v2377, 0.01
        %v2442 = vmul.f32 %v2378, 0.01
        %v2443 = vmul.f32 %v2379, 0.01
        %v2444 = vmul.f32 %v2380, 0.01
        %v2445 = vmul.f32 %v2381, 0.01
        %v2446 = vmul.f32 %v2382, 0.01
        %v2447 = vmul.f32 %v2383, 0.01
        %v2448 = vmul.f32 %v2384, 0.01
        %v2449 = vmul.f32 %v2385, 0.01
        %v2450 = vsel %vm2386, %v2354, %v2418
        %v2451 = vsel %vm2387, %v2355, %v2419
        %v2452 = vsel %vm2388, %v2356, %v2420
        %v2453 = vsel %vm2389, %v2357, %v2421
        %v2454 = vsel %vm2390, %v2358, %v2422
        %v2455 = vsel %vm2391, %v2359, %v2423
        %v2456 = vsel %vm2392, %v2360, %v2424
        %v2457 = vsel %vm2393, %v2361, %v2425
        %v2458 = vsel %vm2394, %v2362, %v2426
        %v2459 = vsel %vm2395, %v2363, %v2427
        %v2460 = vsel %vm2396, %v2364, %v2428
        %v2461 = vsel %vm2397, %v2365, %v2429
        %v2462 = vsel %vm2398, %v2366, %v2430
        %v2463 = vsel %vm2399, %v2367, %v2431
        %v2464 = vsel %vm2400, %v2368, %v2432
        %v2465 = vsel %vm2401, %v2369, %v2433
        %v2466 = vsel %vm2402, %v2370, %v2434
        %v2467 = vsel %vm2403, %v2371, %v2435
        %v2468 = vsel %vm2404, %v2372, %v2436
        %v2469 = vsel %vm2405, %v2373, %v2437
        %v2470 = vsel %vm2406, %v2374, %v2438
        %v2471 = vsel %vm2407, %v2375, %v2439
        %v2472 = vsel %vm2408, %v2376, %v2440
        %v2473 = vsel %vm2409, %v2377, %v2441
        %v2474 = vsel %vm2410, %v2378, %v2442
        %v2475 = vsel %vm2411, %v2379, %v2443
        %v2476 = vsel %vm2412, %v2380, %v2444
        %v2477 = vsel %vm2413, %v2381, %v2445
        %v2478 = vsel %vm2414, %v2382, %v2446
        %v2479 = vsel %vm2415, %v2383, %v2447
        %v2480 = vsel %vm2416, %v2384, %v2448
        %v2481 = vsel %vm2417, %v2385, %v2449
        %2483 = vset.pattern.permute.xlu0 3
        %2484 = vperm.xlu0 %2483, %v1124
        %v2485 = vpop.permute.xlu0 %2484
        %v2488 = vsel %vm1725, %v1115, 0
        %2490 = vmatprep.subr.mxu0 %v2451
        %2491 = vmatpush1.msra.mxu0 %v2450
        %2492 = vmatprep.subr.mxu0 %v2455
        %2493 = vmatpush1.msra.mxu0 %v2454
        %2494 = vmatprep.subr.mxu0 %v2459
        %2495 = vmatpush1.msra.mxu0 %v2458
        %2496 = vmatprep.subr.mxu0 %v2463
        %2497 = vmatpush1.msra.mxu0 %v2462
        %2498 = vmatprep.subr.mxu0 %v2467
        %2499 = vmatpush1.msra.mxu0 %v2466
        %2500 = vmatprep.subr.mxu0 %v2471
        %2501 = vmatpush1.msra.mxu0 %v2470
        %2502 = vmatprep.subr.mxu0 %v2475
        %2503 = vmatpush1.msra.mxu0 %v2474
        %2504 = vmatprep.subr.mxu0 %v2479
        %2505 = vmatpush1.msra.mxu0 %v2478
        %2506 = vmatprep.subr.mxu0 0.0
        %2507 = vmatpush1.msra.mxu0 0.0
        %2508 = vmatprep.subr.mxu0 0.0
        %2509 = vmatpush1.msra.mxu0 0.0
        %2510 = vmatprep.subr.mxu0 0.0
        %2511 = vmatpush1.msra.mxu0 0.0
        %2512 = vmatprep.subr.mxu0 0.0
        %2513 = vmatpush1.msra.mxu0 0.0
        %2514 = vmatprep.subr.mxu0 0.0
        %2515 = vmatpush1.msra.mxu0 0.0
        %2516 = vmatprep.subr.mxu0 0.0
        %2517 = vmatpush1.msra.mxu0 0.0
        %2518 = vmatprep.subr.mxu0 0.0
        %2519 = vmatpush1.msra.mxu0 0.0
        %2520 = vmatprep.subr.mxu0 0.0
        %2521 = vmatpush1.msra.mxu0 0.0
        %2522 = vmatprep.subr.mxu0 0.0
        %2523 = vmatpush1.msra.mxu0 0.0
        %2524 = vmatprep.subr.mxu0 0.0
        %2525 = vmatpush1.msra.mxu0 0.0
        %2526 = vmatprep.subr.mxu0 0.0
        %2527 = vmatpush1.msra.mxu0 0.0
        %2528 = vmatprep.subr.mxu0 0.0
        %2529 = vmatpush1.msra.mxu0 0.0
        %2530 = vmatprep.subr.mxu0 0.0
        %2531 = vmatpush1.msra.mxu0 0.0
        %2532 = vmatprep.subr.mxu0 0.0
        %2533 = vmatpush1.msra.mxu0 0.0
        %2534 = vmatprep.subr.mxu0 0.0
        %2535 = vmatpush1.msra.mxu0 0.0
        %2536 = vmatprep.subr.mxu0 0.0
        %2537 = vmatpush1.msra.mxu0 0.0
        %2538 = vmatprep.subr.mxu0 0.0
        %2539 = vmatpush1.msra.mxu0 0.0
        %2540 = vmatprep.subr.mxu0 0.0
        %2541 = vmatpush1.msra.mxu0 0.0
        %2542 = vmatprep.subr.mxu0 0.0
        %2543 = vmatpush1.msra.mxu0 0.0
        %2544 = vmatprep.subr.mxu0 0.0
        %2545 = vmatpush1.msra.mxu0 0.0
        %2546 = vmatprep.subr.mxu0 0.0
        %2547 = vmatpush1.msra.mxu0 0.0
        %2548 = vmatprep.subr.mxu0 0.0
        %2549 = vmatpush1.msra.mxu0 0.0
        %2550 = vmatprep.subr.mxu0 0.0
        %2551 = vmatpush1.msra.mxu0 0.0
        %2552 = vmatprep.subr.mxu0 0.0
        %2553 = vmatpush1.msra.mxu0 0.0
        %2554 = vmatprep.mubr.f32.mxu0 0.0
        %2555 = vmatmul.mubr.f32.gmra.mrb[0].mxu0 %v2488
        %v2556 = vpop.f32.mrb[0].mxu0
        %v2557 = vadd.f32 %v2485, %v2556
        %v2558 = vpop.f32.mrb[0].mxu0
        %v2559 = vadd.f32 %v2485, %v2558
        %2560 = vdwg.mxu0
        %2561 = vmatprep.subr.mxu0 %v2453
        %2562 = vmatpush1.msra.mxu0 %v2452
        %2563 = vmatprep.subr.mxu0 %v2457
        %2564 = vmatpush1.msra.mxu0 %v2456
        %2565 = vmatprep.subr.mxu0 %v2461
        %2566 = vmatpush1.msra.mxu0 %v2460
        %2567 = vmatprep.subr.mxu0 %v2465
        %2568 = vmatpush1.msra.mxu0 %v2464
        %2569 = vmatprep.subr.mxu0 %v2469
        %2570 = vmatpush1.msra.mxu0 %v2468
        %2571 = vmatprep.subr.mxu0 %v2473
        %2572 = vmatpush1.msra.mxu0 %v2472
        %2573 = vmatprep.subr.mxu0 %v2477
        %2574 = vmatpush1.msra.mxu0 %v2476
        %2575 = vmatprep.subr.mxu0 %v2481
        %2576 = vmatpush1.msra.mxu0 %v2480
        %2577 = vmatprep.subr.mxu0 0.0
        %2578 = vmatpush1.msra.mxu0 0.0
        %2579 = vmatprep.subr.mxu0 0.0
        %2580 = vmatpush1.msra.mxu0 0.0
        %2581 = vmatprep.subr.mxu0 0.0
        %2582 = vmatpush1.msra.mxu0 0.0
        %2583 = vmatprep.subr.mxu0 0.0
        %2584 = vmatpush1.msra.mxu0 0.0
        %2585 = vmatprep.subr.mxu0 0.0
        %2586 = vmatpush1.msra.mxu0 0.0
        %2587 = vmatprep.subr.mxu0 0.0
        %2588 = vmatpush1.msra.mxu0 0.0
        %2589 = vmatprep.subr.mxu0 0.0
        %2590 = vmatpush1.msra.mxu0 0.0
        %2591 = vmatprep.subr.mxu0 0.0
        %2592 = vmatpush1.msra.mxu0 0.0
        %2593 = vmatprep.subr.mxu0 0.0
        %2594 = vmatpush1.msra.mxu0 0.0
        %2595 = vmatprep.subr.mxu0 0.0
        %2596 = vmatpush1.msra.mxu0 0.0
        %2597 = vmatprep.subr.mxu0 0.0
        %2598 = vmatpush1.msra.mxu0 0.0
        %2599 = vmatprep.subr.mxu0 0.0
        %2600 = vmatpush1.msra.mxu0 0.0
        %2601 = vmatprep.subr.mxu0 0.0
        %2602 = vmatpush1.msra.mxu0 0.0
        %2603 = vmatprep.subr.mxu0 0.0
        %2604 = vmatpush1.msra.mxu0 0.0
        %2605 = vmatprep.subr.mxu0 0.0
        %2606 = vmatpush1.msra.mxu0 0.0
        %2607 = vmatprep.subr.mxu0 0.0
        %2608 = vmatpush1.msra.mxu0 0.0
        %2609 = vmatprep.subr.mxu0 0.0
        %2610 = vmatpush1.msra.mxu0 0.0
        %2611 = vmatprep.subr.mxu0 0.0
        %2612 = vmatpush1.msra.mxu0 0.0
        %2613 = vmatprep.subr.mxu0 0.0
        %2614 = vmatpush1.msra.mxu0 0.0
        %2615 = vmatprep.subr.mxu0 0.0
        %2616 = vmatpush1.msra.mxu0 0.0
        %2617 = vmatprep.subr.mxu0 0.0
        %2618 = vmatpush1.msra.mxu0 0.0
        %2619 = vmatprep.subr.mxu0 0.0
        %2620 = vmatpush1.msra.mxu0 0.0
        %2621 = vmatprep.subr.mxu0 0.0
        %2622 = vmatpush1.msra.mxu0 0.0
        %2623 = vmatprep.subr.mxu0 0.0
        %2624 = vmatpush1.msra.mxu0 0.0
        %2625 = vmatprep.mubr.f32.mxu0 0.0
        %2626 = vmatmul.mubr.f32.gmra.mrb[0].mxu0 %v2488
        %v2627 = vpop.f32.mrb[0].mxu0
        %v2628 = vadd.f32 %v2485, %v2627
        %v2629 = vpop.f32.mrb[0].mxu0
        %v2630 = vadd.f32 %v2485, %v2629
        %2631 = vdwg.mxu0
        %v2636 = vcombine.low %v2557, %v2559
        %v2637 = vcombine.low %v2628, %v2630
        %2640 = vst [vmem:[%s191] sm:$0xff] %v2636
        %2641 = vst [vmem:[%s191 + $0x8] sm:$0xff] %v2637
        %s2642 = sand.u32 %s115, 1
        %s2643 = scalar_lea.sflag [#allocation3], %s2642
        %s2644 = sand.u32 %s115, 1
        %s2645 = smul.addr %s2644, 16
        %s2646 = scalar_lea.vmem [#allocation2], %s2645
        // Predicated region
        $region37: #{tpu_custom_call.1} parent=35 // pred_check
          %p2647 = pneg %p125
        $region38: #{tpu_custom_call.1} parent=35 // pred_check_branch
          %2649 = sbr.rel (%p2647) target = $region40
        $region39: #{tpu_custom_call.1} parent=35 // pred_region
          %s2650 = smul.u32 4, %s18
          %s2652 = ssub.s32 256, 256
          %2653 = vsyncadd %s2643, %s2652
          %s2654 = smul.addr %s2650, 64
          %s2655 = scalar_lea.hbm %s4, %s2654
          %s2657 = sshll.u32 %s2646, 4
          %s2658 = int_to_ptr.vmem [resolvable:$true] %s2657
          %2660 = dma.vmem_to_hbm [thread:$0]  %s2658, 256, %s2655, %s2643
        $region40: #{tpu_custom_call.1} parent=35 // pred_fallthru
          _
      $region36: #{tpu_custom_call.1} parent=5 // pred_fallthru
        _
      %p2661 = scmp.le.s32.totalorder 2, %s13
      // Predicated region
      $region41: #{tpu_custom_call.1} parent=5 // pred_check
        %p2662 = pneg %p2661
      $region42: #{tpu_custom_call.1} parent=5 // pred_check_branch
        %2664 = sbr.rel (%p2662) target = $region44
      $region43: #{tpu_custom_call.1} parent=5 // pred_region
        %s2665 = ssub.s32 %s13, 2
        // Predicated region
        $region45: #{tpu_custom_call.1} parent=43 // pred_check
          %p2666 = pneg %p131
        $region46: #{tpu_custom_call.1} parent=43 // pred_check_branch
          %2668 = sbr.rel (%p2666) target = $region48
        $region47: #{tpu_custom_call.1} parent=43 // pred_region
          %s2669 = sand.u32 %s116, 1
          %s2670 = scalar_lea.sflag [#allocation3], %s2669
          %s2671 = sand.u32 %s116, 1
          %s2672 = smul.addr %s2671, 16
          %s2673 = scalar_lea.vmem [#allocation2], %s2672
          %2674 = dma.done %s2670, 256
        $region48: #{tpu_custom_call.1} parent=43 // pred_fallthru
          _
      $region44: #{tpu_custom_call.1} parent=5 // pred_fallthru
        _
    $region6: #{tpu_custom_call.1} parent=1 // loop_footer
      %s17 = sadd.s32 1, %s13
    $region7: #{tpu_custom_call.1} parent=1 // loop_footer_branch
      %12 = sbr.rel target = $region3
    $region8: #{tpu_custom_call.1} parent=1 // loop_exit
      _
    %2675 = vsyncpa [#allocation3], 1
    %s2676 = scalar_lea.sflag [#allocation3], 1
    %2677 = vsyncpa %s2676, 1

</llo_original>
